<compile_context>
chip_gen: v5e
topology: v5e:2x2
jax: 0.10.0
libtpu: 0.0.40
codegen_flags: <defaults>
</compile_context>

<pallas_src>
import functools

import jax
import jax.numpy as jnp
from jax.experimental import pallas as pl
from jax.experimental.pallas import tpu as pltpu


def _tablock_kernel(x2d_ref, xres_ref, wqkv_ref, bqkv_ref, o_ref, *,
                    b_blk, C, N, mxu_dtype, flat_epilogue, approx_recip):
    """One grid step processes b_blk batch elements.

    x2d_ref : (b_blk*C, N)                         projection input, f32
    xres_ref: (b_blk, N, C) or (b_blk, 1, N*C)     residual (x, scrambled layout)
    wqkv_ref: (N, 3N)   [Wq^T * N**-0.5 | Wk^T | Wv^T], mxu_dtype
    bqkv_ref: (1, 3N)   [bq * N**-0.5 | bk | bv], f32
    o_ref   : same layout as xres_ref
    """
    x2d = x2d_ref[...].astype(mxu_dtype)          # in-kernel cast (no extra HBM pass)
    w = wqkv_ref[...]
    b = bqkv_ref[...]

    # Fused QKV projection: one wide MXU matmul with f32 accumulation.
    qkv = jnp.dot(x2d, w, preferred_element_type=jnp.float32) + b    # (rows, 3N)

    q = qkv[:, 0 * N:1 * N].reshape(b_blk, C, N)
    k = qkv[:, 1 * N:2 * N].reshape(b_blk, C, N)
    v = qkv[:, 2 * N:3 * N].reshape(b_blk, C, N)

    # s = (q * N**-0.5) @ k^T per batch element (scale pre-folded into Wq / bq).
    s = jnp.einsum('bcd,bed->bce', q.astype(mxu_dtype), k.astype(mxu_dtype),
                   preferred_element_type=jnp.float32)               # (b, C, C)

    # Numerically stable softmax; normalization deferred to the epilogue.
    s = s - jnp.max(s, axis=-1, keepdims=True)
    p = jnp.exp(s)                                                   # un-normalized
    inv_l = pl.reciprocal(jnp.sum(p, axis=-1), approx=approx_recip)  # (b, C)

    # Second contraction with swapped operand roles: the MXU directly produces
    # the (b, N, C) "scrambled" layout, avoiding an f32 XLU transpose.
    #   av[b, n, c] = sum_e v[b, e, n] * p[b, c, e] = (p @ v)[b, c, n]
    av = jnp.einsum('ben,bce->bnc', v.astype(mxu_dtype), p.astype(mxu_dtype),
                    preferred_element_type=jnp.float32)              # (b, N, C)

    # Epilogue: softmax normalization + residual add fused on the VPU.
    av = av * inv_l[:, None, :]
    if flat_epilogue:
        av = av.reshape(b_blk, 1, N * C)          # lane-dense store path (C < 128)
    # TODO(synk): nn.Dropout(0.1) is identity in eval/inference; no RNG drop applied.
    o_ref[...] = (av + xres_ref[...].astype(jnp.float32)).astype(o_ref.dtype)


def _resident_spec(shape, index_map):
    """Spec for grid-resident weights/bias: single-buffered — their index_map is
    constant, so a second pipeline buffer would be pure VMEM waste."""
    try:
        return pl.BlockSpec(shape, index_map, pipeline_mode=pl.Buffered(1))
    except (AttributeError, TypeError):   # older jax without pipeline_mode/Buffered
        return pl.BlockSpec(shape, index_map)


def _vmem_budget_bytes():
    """Generation-aware scoped-VMEM cap with headroom for Mosaic internal scratch."""
    cap = 128 * 2 ** 20
    try:
        cap = int(pltpu.get_tpu_info().vmem_capacity_bytes)
    except Exception:                      # non-TPU backend / interpret mode
        pass
    if cap <= 64 * 2 ** 20:                # v7x-class: leave ~8 MiB headroom
        return cap - 8 * 2 ** 20
    return min(cap - 16 * 2 ** 20, 112 * 2 ** 20)   # v5e / v6e (128 MiB physical)


def _pick_batch_block(B, C, *, target_rows=256, min_grid_steps=4):
    """Largest divisor of B with b_blk*C ~ target_rows while keeping at least
    min(min_grid_steps, B) grid steps (pipeline overlap; feeds both v7x cores)."""
    # TODO(synk): use target_rows=128 on v5e (128-wide MXU) once the chip
    # generation is cheaply queryable here.
    bb = max(1, min(B, target_rows // max(C, 1)))
    while B % bb:
        bb -= 1
    want_steps = min(min_grid_steps, B)
    while bb > 1 and B // bb < want_steps:
        bb -= 1
        while B % bb:
            bb -= 1
    return bb


def _estimate_vmem_bytes(b_blk, C, N, x_itemsize, w_itemsize):
    """Rough per-step VMEM footprint (double-buffered act I/O + resident weights)."""
    rows = b_blk * C
    act_in = rows * N * x_itemsize             # x2d block (f32 in)
    res_in = b_blk * N * C * x_itemsize        # residual block
    out_bl = b_blk * N * C * x_itemsize        # output block
    wgt = N * 3 * N * w_itemsize + 3 * N * 4   # resident weights + bias (x1, single-buf)
    inter = (rows * 3 * N * (4 + w_itemsize)   # qkv f32 + mxu-dtype q/k/v copies
             + 2 * b_blk * C * C * 4           # logits + exp
             + 2 * b_blk * N * C * 4)          # av + epilogue temp
    return 2 * (act_in + res_in + out_bl) + wgt + inter


def tablock_forward(x, wq, bq, wk, bk, wv, bv, *, mxu_dtype=None, batch_block=None):
    """TABlock forward.  x: (B, C, N); Linear weights (N, N) / biases (N,) in
    PyTorch layout (y = x @ W.T + b).  mxu_dtype=None -> bf16 on TPU, f32 on
    other backends (CPU interpret has no bf16 x bf16 = f32 dot)."""
    x = jnp.asarray(x)
    B, C, N = x.shape
    scale = float(N) ** -0.5

    if mxu_dtype is None:
        mxu_dtype = jnp.bfloat16 if jax.default_backend() == "tpu" else jnp.float32
    mxu_dtype = jnp.dtype(mxu_dtype)
    approx_recip = (mxu_dtype != jnp.dtype(jnp.float32))

    # ---- host-side prep: tiny one-time weight fusion; all x reshapes below are
    # metadata-only.  (N**-0.5 is folded into Wq/bq; it is quantized together
    # with the weights when mxu_dtype is bf16.)
    wqkv_t = jnp.concatenate(
        [jnp.asarray(wq).T * scale, jnp.asarray(wk).T, jnp.asarray(wv).T],
        axis=1).astype(mxu_dtype)                                    # (N, 3N)
    bqkv = jnp.concatenate(
        [jnp.asarray(bq) * scale, jnp.asarray(bk), jnp.asarray(bv)]
    ).reshape(1, 3 * N).astype(jnp.float32)                          # (1, 3N)

    x2d = x.reshape(B * C, N)        # f32 projection view; cast to bf16 in-kernel

    if batch_block is None:
        batch_block = _pick_batch_block(B, C)
    assert B % batch_block == 0, "batch_block must divide B"
    grid = (B // batch_block,)
    rows = batch_block * C

    # Lane-dense epilogue layout: for C < 128 the (..., C) layout would store at
    # C/128 lane occupancy (masked vst) and pad VMEM by 128/C -> flatten instead.
    flat_epilogue = C < 128
    if flat_epilogue:
        xres = x.reshape(B, 1, C * N)                   # residual, flat per batch
        res_block = (batch_block, 1, C * N)
        out_shape = jax.ShapeDtypeStruct((B, 1, C * N), x.dtype)
    else:
        xres = x.reshape(B, N, C)                       # residual, scrambled layout
        res_block = (batch_block, N, C)
        out_shape = jax.ShapeDtypeStruct((B, N, C), x.dtype)
    res_spec = pl.BlockSpec(res_block, lambda g: (g, 0, 0))
    out_spec = pl.BlockSpec(res_block, lambda g: (g, 0, 0))

    vmem_limit = int(min(
        _vmem_budget_bytes(),
        max(32 * 2 ** 20,
            int(1.5 * _estimate_vmem_bytes(batch_block, C, N,
                                           x.dtype.itemsize, mxu_dtype.itemsize)))))
    # TODO(synk): when the resident (N, 3N) weight exceeds ~20 MiB (N >= ~1536 in
    # bf16) add a K-tiling grid axis streaming (tk, 3N) weight slabs so the v7x
    # 64 MiB budget holds without shrinking the batch block.
    # TODO(synk): optional fp8 weight storage for the projection on v7x
    # (fp8-native MXU) — needs accuracy validation, not drop-in.

    kernel = functools.partial(
        _tablock_kernel, b_blk=batch_block, C=C, N=N, mxu_dtype=mxu_dtype,
        flat_epilogue=flat_epilogue, approx_recip=approx_recip)

    grid_spec = pltpu.PrefetchScalarGridSpec(
        num_scalar_prefetch=0,
        grid=grid,
        in_specs=[
            pl.BlockSpec((rows, N), lambda g: (g, 0)),      # x, projection view (f32)
            res_spec,                                       # x, residual/scrambled view
            _resident_spec((N, 3 * N), lambda g: (0, 0)),   # fused W_qkv^T (single-buf)
            _resident_spec((1, 3 * N), lambda g: (0, 0)),   # fused bias     (single-buf)
        ],
        out_specs=out_spec,
    )

    out = pl.pallas_call(
        kernel,
        out_shape=out_shape,
        grid_spec=grid_spec,
        compiler_params=pltpu.CompilerParams(
            dimension_semantics=("parallel",),
            vmem_limit_bytes=vmem_limit),
    )(x2d, xres, wqkv_t, bqkv)

    # Both kernel output layouts hold the per-batch data in exactly the row-major
    # order of (attn@v).transpose(1,2).reshape(B,C,N) + x, so this final reshape
    # back to (B, C, N) is metadata-only.
    return out.reshape(B, C, N)


def _tablock_reference(x, wq, bq, wk, bk, wv, bv):
    """Pure-JAX reference mirroring the PyTorch forward."""
    B, C, N = x.shape
    q = x @ wq.T + bq
    k = x @ wk.T + bk
    v = x @ wv.T + bv
    attn = jax.nn.softmax((q @ jnp.swapaxes(k, -2, -1)) * (N ** -0.5), axis=-1)
    y = (attn @ v).transpose(0, 2, 1).reshape(B, C, N)
    return y + x


def _run_case(key, B, C, N, mxu_dtype, atol, rtol, batch_block=None):
    kx, kwq, kbq, kwk, kbk, kwv, kbv = jax.random.split(key, 7)
    bound = 1.0 / (N ** 0.5)   # PyTorch Linear default init range
    wq = jax.random.uniform(kwq, (N, N), jnp.float32, -bound, bound)
    bq = jax.random.uniform(kbq, (N,), jnp.float32, -bound, bound)
    wk = jax.random.uniform(kwk, (N, N), jnp.float32, -bound, bound)
    bk = jax.random.uniform(kbk, (N,), jnp.float32, -bound, bound)
    wv = jax.random.uniform(kwv, (N, N), jnp.float32, -bound, bound)
    bv = jax.random.uniform(kbv, (N,), jnp.float32, -bound, bound)
    x = jax.random.normal(kx, (B, C, N), jnp.float32)

    out = tablock_forward(x, wq, bq, wk, bk, wv, bv,
                          mxu_dtype=mxu_dtype, batch_block=batch_block)
    out = jax.block_until_ready(out)

    ref = _tablock_reference(x, wq, bq, wk, bk, wv, bv)
    assert out.shape == (B, C, N)
    assert jnp.allclose(out, ref, atol=atol, rtol=rtol), (
        f"mismatch vs reference (B={B} C={C} N={N} mxu_dtype={mxu_dtype})")


if __name__ == "__main__":
    root = jax.random.PRNGKey(0)
    k1, k2, k3 = jax.random.split(root, 3)

    # 1) f32-MXU path (exact reciprocal); C != N exercises the transpose/reshape
    #    scramble.  Tolerance covers MXU default-precision f32 matmuls on TPU.
    _run_case(k1, B=2, C=256, N=128, mxu_dtype=jnp.float32, atol=1e-2, rtol=1e-2)

    # 2) Auto dtype path: bf16 MXU inputs on TPU (f32 accum/softmax/residual),
    #    f32 fallback on non-TPU backends.
    _run_case(k2, B=2, C=256, N=128, mxu_dtype=None, atol=3e-2, rtol=3e-2)

    # 3) Small-C path: batch folding + lane-dense flat epilogue (C < 128).
    _run_case(k3, B=4, C=8, N=128, mxu_dtype=None, atol=3e-2, rtol=3e-2)

    print("KERNEL_OK")
</pallas_src>

<mosaic_0001>
module attributes {stable_mosaic.version = 11 : i64} {
  func.func @_tablock_kernel(%arg0: i32, %arg1: memref<256x128xf32, #tpu.memory_space<vmem>>, %arg2: memref<1x128x256xf32, #tpu.memory_space<vmem>>, %arg3: memref<128x384xf32, #tpu.memory_space<vmem>>, %arg4: memref<1x384xf32, #tpu.memory_space<vmem>>, %arg5: memref<1x128x256xf32, #tpu.memory_space<vmem>>) attributes {dimension_semantics = [#tpu.dimension_semantics<parallel>], iteration_bounds = array<i64: 2>, scalar_prefetch = 0 : i64, scratch_operands = 0 : i64, tpu.core_type = #tpu.core_type<tc>, window_params = [{transform_indices = @transform_0, window_bounds = array<i64: 256, 128>}, {transform_indices = @transform_1, window_bounds = array<i64: 1, 128, 256>}, {pipeline_mode = #tpu.pipeline_mode<synchronous>, transform_indices = @transform_2, window_bounds = array<i64: 128, 384>}, {pipeline_mode = #tpu.pipeline_mode<synchronous>, transform_indices = @transform_3, window_bounds = array<i64: 1, 384>}, {transform_indices = @transform_4, window_bounds = array<i64: 1, 128, 256>}]} {
    %c0 = arith.constant 0 : index
    %c0_0 = arith.constant 0 : index
    %0 = vector.load %arg1[%c0, %c0_0] : memref<256x128xf32, #tpu.memory_space<vmem>>, vector<256x128xf32>
    %c0_1 = arith.constant 0 : index
    %c0_2 = arith.constant 0 : index
    %1 = vector.load %arg3[%c0_1, %c0_2] : memref<128x384xf32, #tpu.memory_space<vmem>>, vector<128x384xf32>
    %c0_3 = arith.constant 0 : index
    %c0_4 = arith.constant 0 : index
    %2 = vector.load %arg4[%c0_3, %c0_4] : memref<1x384xf32, #tpu.memory_space<vmem>>, vector<1x384xf32>
    %cst = arith.constant dense<0.000000e+00> : vector<256x384xf32>
    %3 = tpu.matmul %0, %1, %cst {dimension_numbers = #tpu.dot_dimension_numbers<[1], [0], [0], [1], [0, 0, 1, 1], [], []>} : vector<256x128xf32>, vector<128x384xf32>, vector<256x384xf32> -> vector<256x384xf32>
    %4 = vector.broadcast %2 : vector<1x384xf32> to vector<256x384xf32>
    %5 = arith.addf %3, %4 : vector<256x384xf32>
    %6 = vector.extract_strided_slice %5 {offsets = [0, 0], sizes = [256, 128], strides = [1, 1]} : vector<256x384xf32> to vector<256x128xf32>
    %7 = vector.shape_cast %6 : vector<256x128xf32> to vector<1x256x128xf32>
    %8 = vector.extract_strided_slice %5 {offsets = [0, 128], sizes = [256, 128], strides = [1, 1]} : vector<256x384xf32> to vector<256x128xf32>
    %9 = vector.shape_cast %8 : vector<256x128xf32> to vector<1x256x128xf32>
    %10 = vector.extract_strided_slice %5 {offsets = [0, 256], sizes = [256, 128], strides = [1, 1]} : vector<256x384xf32> to vector<256x128xf32>
    %11 = vector.shape_cast %10 : vector<256x128xf32> to vector<1x256x128xf32>
    "tpu.trace_start"() <{level = 10 : i32, message = "bcd,bed->bce"}> : () -> ()
    %cst_5 = arith.constant dense<0.000000e+00> : vector<1x256x256xf32>
    %12 = tpu.matmul %7, %9, %cst_5 {dimension_numbers = #tpu.dot_dimension_numbers<[2], [2], [1], [1], [0, 0, 0, 1, 1, 1], [0], [0]>} : vector<1x256x128xf32>, vector<1x256x128xf32>, vector<1x256x256xf32> -> vector<1x256x256xf32>
    "tpu.trace_stop"() : () -> ()
    %cst_6 = arith.constant dense<0xFF800000> : vector<1x256xf32>
    %13 = vector.multi_reduction <maximumf>, %12, %cst_6 [2] : vector<1x256x256xf32> to vector<1x256xf32>
    %14 = vector.shape_cast %13 : vector<1x256xf32> to vector<1x256x1xf32>
    %15 = vector.broadcast %14 : vector<1x256x1xf32> to vector<1x256x256xf32>
    %16 = arith.subf %12, %15 : vector<1x256x256xf32>
    %17 = math.exp %16 : vector<1x256x256xf32>
    %cst_7 = arith.constant dense<0.000000e+00> : vector<1x256xf32>
    %18 = vector.multi_reduction <add>, %17, %cst_7 [2] : vector<1x256x256xf32> to vector<1x256xf32>
    %19 = tpu.reciprocal %18 : vector<1x256xf32> -> vector<1x256xf32>
    "tpu.trace_start"() <{level = 10 : i32, message = "ben,bce->bnc"}> : () -> ()
    %cst_8 = arith.constant dense<0.000000e+00> : vector<1x128x256xf32>
    %20 = tpu.matmul %11, %17, %cst_8 {dimension_numbers = #tpu.dot_dimension_numbers<[1], [2], [2], [1], [0, 0, 0, 2, 1, 1], [0], [0]>} : vector<1x256x128xf32>, vector<1x256x256xf32>, vector<1x128x256xf32> -> vector<1x128x256xf32>
    "tpu.trace_stop"() : () -> ()
    %21 = vector.shape_cast %19 : vector<1x256xf32> to vector<1x1x256xf32>
    %22 = vector.broadcast %21 : vector<1x1x256xf32> to vector<1x128x256xf32>
    %23 = arith.mulf %20, %22 : vector<1x128x256xf32>
    %c0_9 = arith.constant 0 : index
    %c0_10 = arith.constant 0 : index
    %c0_11 = arith.constant 0 : index
    %24 = vector.load %arg2[%c0_9, %c0_10, %c0_11] : memref<1x128x256xf32, #tpu.memory_space<vmem>>, vector<1x128x256xf32>
    %25 = arith.addf %23, %24 : vector<1x128x256xf32>
    %c0_12 = arith.constant 0 : index
    %c0_13 = arith.constant 0 : index
    %c0_14 = arith.constant 0 : index
    %26 = vector.load %arg5[%c0_12, %c0_13, %c0_14] : memref<1x128x256xf32, #tpu.memory_space<vmem>>, vector<1x128x256xf32>
    tpu.vector_store %arg5[%c0_12, %c0_13, %c0_14], %25 {strides = array<i32>} : memref<1x128x256xf32, #tpu.memory_space<vmem>>, vector<1x128x256xf32>,
    return
  }
  func.func @transform_0(%arg0: i32) -> (i32, i32) {
    %c0_i32 = arith.constant 0 : i32
    %c0_i32_0 = arith.constant 0 : i32
    return %arg0, %c0_i32 : i32, i32
  }
  func.func @transform_1(%arg0: i32) -> (i32, i32, i32) {
    %c0_i32 = arith.constant 0 : i32
    %c0_i32_0 = arith.constant 0 : i32
    %c0_i32_1 = arith.constant 0 : i32
    return %arg0, %c0_i32, %c0_i32_0 : i32, i32, i32
  }
  func.func @transform_2(%arg0: i32) -> (i32, i32) {
    %c0_i32 = arith.constant 0 : i32
    %c0_i32_0 = arith.constant 0 : i32
    %c0_i32_1 = arith.constant 0 : i32
    return %c0_i32, %c0_i32_0 : i32, i32
  }
  func.func @transform_3(%arg0: i32) -> (i32, i32) {
    %c0_i32 = arith.constant 0 : i32
    %c0_i32_0 = arith.constant 0 : i32
    %c0_i32_1 = arith.constant 0 : i32
    return %c0_i32, %c0_i32_0 : i32, i32
  }
  func.func @transform_4(%arg0: i32) -> (i32, i32, i32) {
    %c0_i32 = arith.constant 0 : i32
    %c0_i32_0 = arith.constant 0 : i32
    %c0_i32_1 = arith.constant 0 : i32
    return %arg0, %c0_i32, %c0_i32_0 : i32, i32, i32
  }
}

</mosaic_0001>

<llo_original>
// kernel: tpu_custom_call.1
$region0: #{tpu_custom_call.1}
  #allocation0 [shape = 'u32[]', space=smem, size = 0x4, offset = 0x4, fixed_abs, tag = 'smem constant byte address 0x4 - core index']
  #allocation1 [shape = 'u32[72,128]{1,0:T(1,128)}', space=vmem, size = 0x9000, scoped, tag = 'internal scratch']
  %s0 = inlined_call_operand.hbm [shape: f32[512,128], index: 0, kind: input, shape index: {}]
  %s1 = inlined_call_operand.hbm [shape: f32[2,128,256], index: 1, kind: input, shape index: {}]
  %s2 = inlined_call_operand.hbm [shape: f32[128,384], index: 2, kind: input, shape index: {}]
  %s3 = inlined_call_operand.hbm [shape: f32[1,384], index: 3, kind: input, shape index: {}]
  %s4 = inlined_call_operand.hbm [shape: f32[2,128,256], index: 4, kind: output, shape index: {}]
  %s5 = sld [smem:[#allocation0]]
  $region65: #{tpu_custom_call.1} parent=0
    _
  %s7 = ssub.s32 1, %s5
  %s8 = scalar_select 0, %s7, %s5
  $region1: #{tpu_custom_call.1} parent=0
    #allocation2 [shape = 'u8[262144]{0}', space=vmem, size = 0x40000, scoped, tag = 'input window, operand 0']
    #allocation3 [shape = 's32[2]{0}', space=sflag, size = 0x8, scoped, tag = 'scoped memory for tpu_custom_call.1']
    #allocation4 [shape = 's32[2]{0}', space=sflag, size = 0x8, scoped, tag = 'scoped memory for tpu_custom_call.1']
    #allocation5 [shape = 'u8[262144]{0}', space=vmem, size = 0x40000, scoped, tag = 'input window, operand 1']
    #allocation6 [shape = 's32[2]{0}', space=sflag, size = 0x8, scoped, tag = 'scoped memory for tpu_custom_call.1']
    #allocation7 [shape = 'u8[196608]{0}', space=vmem, size = 0x30000, scoped, tag = 'input window, operand 2, single buffered']
    #allocation8 [shape = 'u8[1536]{0}', space=vmem, size = 0x800, scoped, tag = 'input window, operand 3, single buffered']
    #allocation9 [shape = 's32[1]{0}', space=sflag, size = 0x4, scoped, tag = 'scoped memory for tpu_custom_call.1']
    #allocation10 [shape = 'u8[262144]{0}', space=vmem, size = 0x40000, scoped, tag = 'output window, operand 0']
    %9 = vsyncpa [#allocation3], 0
    %s10 = scalar_lea.sflag [#allocation3], 1
    %11 = vsyncpa %s10, 0
    %12 = vsyncpa [#allocation6], 0
    %s13 = scalar_lea.sflag [#allocation6], 1
    %14 = vsyncpa %s13, 0
    %15 = vsyncpa [#allocation9], 0
    %16 = vsyncpa [#allocation4], 0
    %s17 = scalar_lea.sflag [#allocation4], 1
    %18 = vsyncpa %s17, 0
    loop: start=0, step=1, limit=4
    $region2: #{tpu_custom_call.1} parent=1 // loop_pre_header
      _
    $region3: #{tpu_custom_call.1} parent=1 // loop_header
      %s20 = sphi 0, %s24
      %p21 = scmp.ge.s32.totalorder %s20, 4
      %s30 = sphi 0, %s32
      %s33 = sphi 0, %s30
      %s34 = sphi 0, %s33
      %s50 = sphi 0, %s34
      %s56 = sphi 0, %s58
      %s59 = sphi 0, %s56
      %s60 = sphi 0, %s59
      %s76 = sphi 0, %s60
      %s80 = sphi 0, %s80
      %s82 = sphi 0, %s80
      %s83 = sphi 0, %s82
      %s97 = sphi 0, %s83
      %s101 = sphi 0, %s101
      %s103 = sphi 0, %s101
      %s104 = sphi 0, %s103
      %s118 = sphi 0, %s104
      %s124 = sphi 0, %s126
      %s127 = sphi 0, %s124
      %s128 = sphi 0, %s127
      %s144 = sphi 0, %s128
    $region4: #{tpu_custom_call.1} parent=1 // loop_header_branch
      %23 = sbr.rel (%p21) target = $region8
    $region5: #{tpu_custom_call.1} parent=1 // loop_body
      %s25 = ssub.s32 %s20, 1
      %s26 = ssub.s32 %s20, 2
      %s27 = sadd.s32 %s20, 1
      %s28 = ssub.s32 %s20, %s27
      %p29 = scmp.eq.s32.totalorder %s28, 0
      %s31 = sadd.s32 %s30, 1
      %s32 = scalar_select %p29, %s30, %s31
      %p35 = pneg %p29
      %p36 = scmp.eq.s32.totalorder %s20, 1
      %p37 = por %p35, %p36
      %p38 = scmp.ne.s32.totalorder %s30, %s33
      %p39 = scmp.eq.s32.totalorder %s20, 0
      %p40 = por %p38, %p39
      %p41 = scmp.ne.s32.totalorder %s30, %s33
      %p42 = scmp.eq.s32.totalorder %s25, 1
      %p43 = por %p41, %p42
      %p44 = scmp.ne.s32.totalorder %s33, %s34
      %p45 = scmp.eq.s32.totalorder %s25, 0
      %p46 = por %p44, %p45
      %p47 = scmp.ne.s32.totalorder %s33, %s34
      %p48 = scmp.eq.s32.totalorder %s26, 1
      %p49 = por %p47, %p48
      %p51 = scmp.ne.s32.totalorder %s34, %s50
      %p52 = scmp.eq.s32.totalorder %s26, 0
      %p53 = por %p51, %p52
      %s54 = ssub.s32 %s20, %s27
      %p55 = scmp.eq.s32.totalorder %s54, 0
      %s57 = sadd.s32 %s56, 1
      %s58 = scalar_select %p55, %s56, %s57
      %p61 = pneg %p55
      %p62 = scmp.eq.s32.totalorder %s20, 1
      %p63 = por %p61, %p62
      %p64 = scmp.ne.s32.totalorder %s56, %s59
      %p65 = scmp.eq.s32.totalorder %s20, 0
      %p66 = por %p64, %p65
      %p67 = scmp.ne.s32.totalorder %s56, %s59
      %p68 = scmp.eq.s32.totalorder %s25, 1
      %p69 = por %p67, %p68
      %p70 = scmp.ne.s32.totalorder %s59, %s60
      %p71 = scmp.eq.s32.totalorder %s25, 0
      %p72 = por %p70, %p71
      %p73 = scmp.ne.s32.totalorder %s59, %s60
      %p74 = scmp.eq.s32.totalorder %s26, 1
      %p75 = por %p73, %p74
      %p77 = scmp.ne.s32.totalorder %s60, %s76
      %p78 = scmp.eq.s32.totalorder %s26, 0
      %p79 = por %p77, %p78
      %s81 = sadd.s32 %s80, 1
      %p84 = scmp.eq.s32.totalorder %s20, 1
      %p85 = scmp.ne.s32.totalorder %s80, %s82
      %p86 = scmp.eq.s32.totalorder %s20, 0
      %p87 = por %p85, %p86
      %p88 = scmp.ne.s32.totalorder %s80, %s82
      %p89 = scmp.eq.s32.totalorder %s25, 1
      %p90 = por %p88, %p89
      %p91 = scmp.ne.s32.totalorder %s82, %s83
      %p92 = scmp.eq.s32.totalorder %s25, 0
      %p93 = por %p91, %p92
      %p94 = scmp.ne.s32.totalorder %s82, %s83
      %p95 = scmp.eq.s32.totalorder %s26, 1
      %p96 = por %p94, %p95
      %p98 = scmp.ne.s32.totalorder %s83, %s97
      %p99 = scmp.eq.s32.totalorder %s26, 0
      %p100 = por %p98, %p99
      %s102 = sadd.s32 %s101, 1
      %p105 = scmp.eq.s32.totalorder %s20, 1
      %p106 = scmp.ne.s32.totalorder %s101, %s103
      %p107 = scmp.eq.s32.totalorder %s20, 0
      %p108 = por %p106, %p107
      %p109 = scmp.ne.s32.totalorder %s101, %s103
      %p110 = scmp.eq.s32.totalorder %s25, 1
      %p111 = por %p109, %p110
      %p112 = scmp.ne.s32.totalorder %s103, %s104
      %p113 = scmp.eq.s32.totalorder %s25, 0
      %p114 = por %p112, %p113
      %p115 = scmp.ne.s32.totalorder %s103, %s104
      %p116 = scmp.eq.s32.totalorder %s26, 1
      %p117 = por %p115, %p116
      %p119 = scmp.ne.s32.totalorder %s104, %s118
      %p120 = scmp.eq.s32.totalorder %s26, 0
      %p121 = por %p119, %p120
      %s122 = ssub.s32 %s20, %s27
      %p123 = scmp.eq.s32.totalorder %s122, 0
      %s125 = sadd.s32 %s124, 1
      %s126 = scalar_select %p123, %s124, %s125
      %p129 = pneg %p123
      %p130 = scmp.eq.s32.totalorder %s20, 1
      %p131 = por %p129, %p130
      %p132 = scmp.ne.s32.totalorder %s124, %s127
      %p133 = scmp.eq.s32.totalorder %s20, 0
      %p134 = por %p132, %p133
      %p135 = scmp.ne.s32.totalorder %s124, %s127
      %p136 = scmp.eq.s32.totalorder %s25, 1
      %p137 = por %p135, %p136
      %p138 = scmp.ne.s32.totalorder %s127, %s128
      %p139 = scmp.eq.s32.totalorder %s25, 0
      %p140 = por %p138, %p139
      %p141 = scmp.ne.s32.totalorder %s127, %s128
      %p142 = scmp.eq.s32.totalorder %s26, 1
      %p143 = por %p141, %p142
      %p145 = scmp.ne.s32.totalorder %s128, %s144
      %p146 = scmp.eq.s32.totalorder %s26, 0
      %p147 = por %p145, %p146
      %p148 = scmp.le.s32.totalorder 1, %s20
      %p149 = scmp.lt.s32.totalorder %s20, 3
      %p150 = pnand %p148, %p149
      %p151 = pneg %p150
      // Predicated region
      $region9: #{tpu_custom_call.1} parent=5 // pred_check
        _
      $region10: #{tpu_custom_call.1} parent=5 // pred_check_branch
        %153 = sbr.rel (%p150) target = $region12
      $region11: #{tpu_custom_call.1} parent=5 // pred_region
        %s154 = ssub.s32 %s20, 1
        // Predicated region
        $region13: #{tpu_custom_call.1} parent=11 // pred_check
          %p155 = pneg %p93
        $region14: #{tpu_custom_call.1} parent=11 // pred_check_branch
          %157 = sbr.rel (%p155) target = $region16
        $region15: #{tpu_custom_call.1} parent=11 // pred_region
          %159 = vsyncadd [#allocation6], 0
          %s160 = sshll.u32 %s2, 4
          %s161 = int_to_ptr.hbm [resolvable:$true] %s160
          %s162 = sshll.u32 [#allocation7], 4
          %s163 = int_to_ptr.vmem [resolvable:$true] %s162
          %168 = dma.hbm_to_vmem [thread:$0]  %s161, 6144, %s163, [#allocation6], 384, 384, 24
        $region16: #{tpu_custom_call.1} parent=11 // pred_fallthru
          _
        // Predicated region
        $region17: #{tpu_custom_call.1} parent=11 // pred_check
          %p169 = pneg %p114
        $region18: #{tpu_custom_call.1} parent=11 // pred_check_branch
          %171 = sbr.rel (%p169) target = $region20
        $region19: #{tpu_custom_call.1} parent=11 // pred_region
          %173 = vsyncadd [#allocation9], 0
          %s175 = sshll.u32 %s3, 4
          %s176 = int_to_ptr.hbm [resolvable:$true] %s175
          %s177 = sshll.u32 [#allocation8], 4
          %s178 = int_to_ptr.vmem [resolvable:$true] %s177
          %180 = dma.hbm_to_vmem [thread:$0]  %s176, 48, %s178, [#allocation9]
        $region20: #{tpu_custom_call.1} parent=11 // pred_fallthru
          _
      $region12: #{tpu_custom_call.1} parent=5 // pred_fallthru
        _
      %p181 = scmp.lt.s32.totalorder %s20, 2
      // Predicated region
      $region21: #{tpu_custom_call.1} parent=5 // pred_check
        %p182 = pneg %p181
      $region22: #{tpu_custom_call.1} parent=5 // pred_check_branch
        %184 = sbr.rel (%p182) target = $region24
      $region23: #{tpu_custom_call.1} parent=5 // pred_region
        // Predicated region
        $region25: #{tpu_custom_call.1} parent=23 // pred_check
          %p185 = pneg %p40
        $region26: #{tpu_custom_call.1} parent=23 // pred_check_branch
          %187 = sbr.rel (%p185) target = $region28
        $region27: #{tpu_custom_call.1} parent=23 // pred_region
          %s188 = sand.u32 %s30, 1
          %s189 = scalar_lea.sflag [#allocation3], %s188
          %s190 = sand.u32 %s30, 1
          %s191 = smul.addr %s190, 256
          %s192 = scalar_lea.vmem [#allocation2], %s191
          %s193 = smul.u32 32, %s20
          %195 = vsyncadd %s189, 0
          %s196 = smul.addr %s193, 8
          %s197 = scalar_lea.hbm %s0, %s196
          %s198 = sshll.u32 %s197, 4
          %s199 = int_to_ptr.hbm [resolvable:$true] %s198
          %s200 = sshll.u32 %s192, 4
          %s201 = int_to_ptr.vmem [resolvable:$true] %s200
          %206 = dma.hbm_to_vmem [thread:$0]  %s199, 4096, %s201, %s189, 128, 128, 8
        $region28: #{tpu_custom_call.1} parent=23 // pred_fallthru
          _
        // Predicated region
        $region29: #{tpu_custom_call.1} parent=23 // pred_check
          %p207 = pneg %p66
        $region30: #{tpu_custom_call.1} parent=23 // pred_check_branch
          %209 = sbr.rel (%p207) target = $region32
        $region31: #{tpu_custom_call.1} parent=23 // pred_region
          %s210 = sand.u32 %s20, 1
          %s211 = scalar_lea.sflag [#allocation6], %s210
          %s212 = sand.u32 %s56, 1
          %s213 = smul.addr %s212, 256
          %s214 = scalar_lea.vmem [#allocation5], %s213
          %216 = vsyncadd %s211, 0
          %s217 = smul.addr %s20, 32
          %s218 = smul.addr %s217, 8
          %s219 = scalar_lea.hbm %s1, %s218
          %s220 = sshll.u32 %s219, 4
          %s221 = int_to_ptr.hbm [resolvable:$true] %s220
          %s222 = sshll.u32 %s214, 4
          %s223 = int_to_ptr.vmem [resolvable:$true] %s222
          %228 = dma.hbm_to_vmem [thread:$0]  %s221, 4096, %s223, %s211, 256, 256, 16
        $region32: #{tpu_custom_call.1} parent=23 // pred_fallthru
          _
      $region24: #{tpu_custom_call.1} parent=5 // pred_fallthru
        _
      %p229 = scmp.le.s32.totalorder 1, %s20
      %p230 = scmp.lt.s32.totalorder %s20, 3
      %p231 = pnand %p229, %p230
      %p232 = pneg %p231
      // Predicated region
      $region33: #{tpu_custom_call.1} parent=5 // pred_check
        _
      $region34: #{tpu_custom_call.1} parent=5 // pred_check_branch
        %234 = sbr.rel (%p231) target = $region36
      $region35: #{tpu_custom_call.1} parent=5 // pred_region
        %s235 = ssub.s32 %s20, 1
        %s236 = sand.u32 %s33, 1
        %s237 = scalar_lea.sflag [#allocation3], %s236
        %s238 = sand.u32 %s33, 1
        %s239 = smul.addr %s238, 256
        %s240 = scalar_lea.vmem [#allocation2], %s239
        // Predicated region
        $region37: #{tpu_custom_call.1} parent=35 // pred_check
          %p241 = pneg %p46
        $region38: #{tpu_custom_call.1} parent=35 // pred_check_branch
          %243 = sbr.rel (%p241) target = $region40
        $region39: #{tpu_custom_call.1} parent=35 // pred_region
          %245 = dma.done %s237, 4096
        $region40: #{tpu_custom_call.1} parent=35 // pred_fallthru
          _
        %s246 = sand.u32 %s25, 1
        %s247 = scalar_lea.sflag [#allocation6], %s246
        %s248 = sand.u32 %s59, 1
        %s249 = smul.addr %s248, 256
        %s250 = scalar_lea.vmem [#allocation5], %s249
        // Predicated region
        $region41: #{tpu_custom_call.1} parent=35 // pred_check
          %p251 = pneg %p72
        $region42: #{tpu_custom_call.1} parent=35 // pred_check_branch
          %253 = sbr.rel (%p251) target = $region44
        $region43: #{tpu_custom_call.1} parent=35 // pred_region
          %255 = dma.done %s247, 4096
        $region44: #{tpu_custom_call.1} parent=35 // pred_fallthru
          _
        // Predicated region
        $region45: #{tpu_custom_call.1} parent=35 // pred_check
          %p256 = pneg %p93
        $region46: #{tpu_custom_call.1} parent=35 // pred_check_branch
          %258 = sbr.rel (%p256) target = $region48
        $region47: #{tpu_custom_call.1} parent=35 // pred_region
          %260 = dma.done [#allocation6], 6144
        $region48: #{tpu_custom_call.1} parent=35 // pred_fallthru
          _
        // Predicated region
        $region49: #{tpu_custom_call.1} parent=35 // pred_check
          %p261 = pneg %p114
        $region50: #{tpu_custom_call.1} parent=35 // pred_check_branch
          %263 = sbr.rel (%p261) target = $region52
        $region51: #{tpu_custom_call.1} parent=35 // pred_region
          %265 = dma.done [#allocation9], 48
        $region52: #{tpu_custom_call.1} parent=35 // pred_fallthru
          _
        %s266 = sand.u32 %s33, 1
        %s267 = scalar_lea.sflag [#allocation3], %s266
        %s268 = sand.u32 %s33, 1
        %s269 = smul.addr %s268, 256
        %s270 = scalar_lea.vmem [#allocation2], %s269
        %p271 = pneg %p46
        %p272 = pneg %p43
        %s273 = sand.u32 %s25, 1
        %s274 = scalar_lea.sflag [#allocation6], %s273
        %s275 = sand.u32 %s59, 1
        %s276 = smul.addr %s275, 256
        %s277 = scalar_lea.vmem [#allocation5], %s276
        %p278 = pneg %p72
        %p279 = pneg %p69
        %p280 = pneg %p93
        %p281 = pneg %p90
        %p282 = pneg %p114
        %p283 = pneg %p111
        %p284 = pneg %p140
        %p285 = pneg %p137
        %s286 = sand.u32 %s127, 1
        %s287 = scalar_lea.sflag [#allocation4], %s286
        %s288 = sand.u32 %s127, 1
        %s289 = smul.addr %s288, 256
        %s290 = scalar_lea.vmem [#allocation10], %s289
        %s291 = smul.u32 32, %s25
        %v292 = vld [vmem:[%s240] sm:$0xff]
        %v293 = vld [vmem:[%s240 + $0x8] sm:$0xff]
        %v294 = vld [vmem:[%s240 + $0x10] sm:$0xff]
        %v295 = vld [vmem:[%s240 + $0x18] sm:$0xff]
        %v296 = vld [vmem:[%s240 + $0x20] sm:$0xff]
        %v297 = vld [vmem:[%s240 + $0x28] sm:$0xff]
        %v298 = vld [vmem:[%s240 + $0x30] sm:$0xff]
        %v299 = vld [vmem:[%s240 + $0x38] sm:$0xff]
        %v300 = vld [vmem:[%s240 + $0x40] sm:$0xff]
        %v301 = vld [vmem:[%s240 + $0x48] sm:$0xff]
        %v302 = vld [vmem:[%s240 + $0x50] sm:$0xff]
        %v303 = vld [vmem:[%s240 + $0x58] sm:$0xff]
        %v304 = vld [vmem:[%s240 + $0x60] sm:$0xff]
        %v305 = vld [vmem:[%s240 + $0x68] sm:$0xff]
        %v306 = vld [vmem:[%s240 + $0x70] sm:$0xff]
        %v307 = vld [vmem:[%s240 + $0x78] sm:$0xff]
        %v308 = vld [vmem:[%s240 + $0x80] sm:$0xff]
        %v309 = vld [vmem:[%s240 + $0x88] sm:$0xff]
        %v310 = vld [vmem:[%s240 + $0x90] sm:$0xff]
        %v311 = vld [vmem:[%s240 + $0x98] sm:$0xff]
        %v312 = vld [vmem:[%s240 + $0xa0] sm:$0xff]
        %v313 = vld [vmem:[%s240 + $0xa8] sm:$0xff]
        %v314 = vld [vmem:[%s240 + $0xb0] sm:$0xff]
        %v315 = vld [vmem:[%s240 + $0xb8] sm:$0xff]
        %v316 = vld [vmem:[%s240 + $0xc0] sm:$0xff]
        %v317 = vld [vmem:[%s240 + $0xc8] sm:$0xff]
        %v318 = vld [vmem:[%s240 + $0xd0] sm:$0xff]
        %v319 = vld [vmem:[%s240 + $0xd8] sm:$0xff]
        %v320 = vld [vmem:[%s240 + $0xe0] sm:$0xff]
        %v321 = vld [vmem:[%s240 + $0xe8] sm:$0xff]
        %v322 = vld [vmem:[%s240 + $0xf0] sm:$0xff]
        %v323 = vld [vmem:[%s240 + $0xf8] sm:$0xff]
        %v324 = vld [vmem:[#allocation7] sm:$0xff]
        %v325 = vld [vmem:[#allocation7 + $0x8] sm:$0xff]
        %v326 = vld [vmem:[#allocation7 + $0x10] sm:$0xff]
        %v327 = vld [vmem:[#allocation7 + $0x18] sm:$0xff]
        %v328 = vld [vmem:[#allocation7 + $0x20] sm:$0xff]
        %v329 = vld [vmem:[#allocation7 + $0x28] sm:$0xff]
        %v330 = vld [vmem:[#allocation7 + $0x30] sm:$0xff]
        %v331 = vld [vmem:[#allocation7 + $0x38] sm:$0xff]
        %v332 = vld [vmem:[#allocation7 + $0x40] sm:$0xff]
        %v333 = vld [vmem:[#allocation7 + $0x48] sm:$0xff]
        %v334 = vld [vmem:[#allocation7 + $0x50] sm:$0xff]
        %v335 = vld [vmem:[#allocation7 + $0x58] sm:$0xff]
        %v336 = vld [vmem:[#allocation7 + $0x60] sm:$0xff]
        %v337 = vld [vmem:[#allocation7 + $0x68] sm:$0xff]
        %v338 = vld [vmem:[#allocation7 + $0x70] sm:$0xff]
        %v339 = vld [vmem:[#allocation7 + $0x78] sm:$0xff]
        %v340 = vld [vmem:[#allocation7 + $0x80] sm:$0xff]
        %v341 = vld [vmem:[#allocation7 + $0x88] sm:$0xff]
        %v342 = vld [vmem:[#allocation7 + $0x90] sm:$0xff]
        %v343 = vld [vmem:[#allocation7 + $0x98] sm:$0xff]
        %v344 = vld [vmem:[#allocation7 + $0xa0] sm:$0xff]
        %v345 = vld [vmem:[#allocation7 + $0xa8] sm:$0xff]
        %v346 = vld [vmem:[#allocation7 + $0xb0] sm:$0xff]
        %v347 = vld [vmem:[#allocation7 + $0xb8] sm:$0xff]
        %v348 = vld [vmem:[#allocation7 + $0xc0] sm:$0xff]
        %v349 = vld [vmem:[#allocation7 + $0xc8] sm:$0xff]
        %v350 = vld [vmem:[#allocation7 + $0xd0] sm:$0xff]
        %v351 = vld [vmem:[#allocation7 + $0xd8] sm:$0xff]
        %v352 = vld [vmem:[#allocation7 + $0xe0] sm:$0xff]
        %v353 = vld [vmem:[#allocation7 + $0xe8] sm:$0xff]
        %v354 = vld [vmem:[#allocation7 + $0xf0] sm:$0xff]
        %v355 = vld [vmem:[#allocation7 + $0xf8] sm:$0xff]
        %v356 = vld [vmem:[#allocation7 + $0x100] sm:$0xff]
        %v357 = vld [vmem:[#allocation7 + $0x108] sm:$0xff]
        %v358 = vld [vmem:[#allocation7 + $0x110] sm:$0xff]
        %v359 = vld [vmem:[#allocation7 + $0x118] sm:$0xff]
        %v360 = vld [vmem:[#allocation7 + $0x120] sm:$0xff]
        %v361 = vld [vmem:[#allocation7 + $0x128] sm:$0xff]
        %v362 = vld [vmem:[#allocation7 + $0x130] sm:$0xff]
        %v363 = vld [vmem:[#allocation7 + $0x138] sm:$0xff]
        %v364 = vld [vmem:[#allocation7 + $0x140] sm:$0xff]
        %v365 = vld [vmem:[#allocation7 + $0x148] sm:$0xff]
        %v366 = vld [vmem:[#allocation7 + $0x150] sm:$0xff]
        %v367 = vld [vmem:[#allocation7 + $0x158] sm:$0xff]
        %v368 = vld [vmem:[#allocation7 + $0x160] sm:$0xff]
        %v369 = vld [vmem:[#allocation7 + $0x168] sm:$0xff]
        %v370 = vld [vmem:[#allocation7 + $0x170] sm:$0xff]
        %v371 = vld [vmem:[#allocation7 + $0x178] sm:$0xff]
        %v372 = vld [vmem:[#allocation8] sm:$0x7]
        %v374 = vperm.slane %v372, 0
        %v375 = vperm.slane %v372, 1
        %v376 = vperm.slane %v372, 2
        %380 = vmatpush.msra.mxu0 %v369
        %381 = vmatpush.msra.mxu0 %v366
        %382 = vmatpush.msra.mxu0 %v363
        %383 = vmatpush.msra.mxu0 %v360
        %384 = vmatpush.msra.mxu0 %v357
        %385 = vmatpush.msra.mxu0 %v354
        %386 = vmatpush.msra.mxu0 %v351
        %387 = vmatpush.msra.mxu0 %v348
        %388 = vmatpush.msra.mxu0 %v345
        %389 = vmatpush.msra.mxu0 %v342
        %390 = vmatpush.msra.mxu0 %v339
        %391 = vmatpush.msra.mxu0 %v336
        %392 = vmatpush.msra.mxu0 %v333
        %393 = vmatpush.msra.mxu0 %v330
        %394 = vmatpush.msra.mxu0 %v327
        %395 = vmatpush.msra.mxu0 %v324
        %396 = vmatmul.f32.gmra.mxu0 %v292
        %v397 = vpop.f32.mrf.mxu0
        %v398 = vadd.f32 %v374, %v397
        %399 = vmatmul.f32.gmra.mxu0 %v293
        %v400 = vpop.f32.mrf.mxu0
        %v401 = vadd.f32 %v374, %v400
        %402 = vmatmul.f32.gmra.mxu0 %v294
        %v403 = vpop.f32.mrf.mxu0
        %v404 = vadd.f32 %v374, %v403
        %405 = vmatmul.f32.gmra.mxu0 %v295
        %v406 = vpop.f32.mrf.mxu0
        %v407 = vadd.f32 %v374, %v406
        %408 = vmatmul.f32.gmra.mxu0 %v296
        %v409 = vpop.f32.mrf.mxu0
        %v410 = vadd.f32 %v374, %v409
        %411 = vmatmul.f32.gmra.mxu0 %v297
        %v412 = vpop.f32.mrf.mxu0
        %v413 = vadd.f32 %v374, %v412
        %414 = vmatmul.f32.gmra.mxu0 %v298
        %v415 = vpop.f32.mrf.mxu0
        %v416 = vadd.f32 %v374, %v415
        %417 = vmatmul.f32.gmra.mxu0 %v299
        %v418 = vpop.f32.mrf.mxu0
        %v419 = vadd.f32 %v374, %v418
        %420 = vmatmul.f32.gmra.mxu0 %v300
        %v421 = vpop.f32.mrf.mxu0
        %v422 = vadd.f32 %v374, %v421
        %423 = vmatmul.f32.gmra.mxu0 %v301
        %v424 = vpop.f32.mrf.mxu0
        %v425 = vadd.f32 %v374, %v424
        %426 = vmatmul.f32.gmra.mxu0 %v302
        %v427 = vpop.f32.mrf.mxu0
        %v428 = vadd.f32 %v374, %v427
        %429 = vmatmul.f32.gmra.mxu0 %v303
        %v430 = vpop.f32.mrf.mxu0
        %v431 = vadd.f32 %v374, %v430
        %432 = vmatmul.f32.gmra.mxu0 %v304
        %v433 = vpop.f32.mrf.mxu0
        %v434 = vadd.f32 %v374, %v433
        %435 = vmatmul.f32.gmra.mxu0 %v305
        %v436 = vpop.f32.mrf.mxu0
        %v437 = vadd.f32 %v374, %v436
        %438 = vmatmul.f32.gmra.mxu0 %v306
        %v439 = vpop.f32.mrf.mxu0
        %v440 = vadd.f32 %v374, %v439
        %441 = vmatmul.f32.gmra.mxu0 %v307
        %v442 = vpop.f32.mrf.mxu0
        %v443 = vadd.f32 %v374, %v442
        %444 = vmatmul.f32.gmra.mxu0 %v308
        %v445 = vpop.f32.mrf.mxu0
        %v446 = vadd.f32 %v374, %v445
        %447 = vmatmul.f32.gmra.mxu0 %v309
        %v448 = vpop.f32.mrf.mxu0
        %v449 = vadd.f32 %v374, %v448
        %450 = vmatmul.f32.gmra.mxu0 %v310
        %v451 = vpop.f32.mrf.mxu0
        %v452 = vadd.f32 %v374, %v451
        %453 = vmatmul.f32.gmra.mxu0 %v311
        %v454 = vpop.f32.mrf.mxu0
        %v455 = vadd.f32 %v374, %v454
        %456 = vmatmul.f32.gmra.mxu0 %v312
        %v457 = vpop.f32.mrf.mxu0
        %v458 = vadd.f32 %v374, %v457
        %459 = vmatmul.f32.gmra.mxu0 %v313
        %v460 = vpop.f32.mrf.mxu0
        %v461 = vadd.f32 %v374, %v460
        %462 = vmatmul.f32.gmra.mxu0 %v314
        %v463 = vpop.f32.mrf.mxu0
        %v464 = vadd.f32 %v374, %v463
        %465 = vmatmul.f32.gmra.mxu0 %v315
        %v466 = vpop.f32.mrf.mxu0
        %v467 = vadd.f32 %v374, %v466
        %468 = vmatmul.f32.gmra.mxu0 %v316
        %v469 = vpop.f32.mrf.mxu0
        %v470 = vadd.f32 %v374, %v469
        %471 = vmatmul.f32.gmra.mxu0 %v317
        %v472 = vpop.f32.mrf.mxu0
        %v473 = vadd.f32 %v374, %v472
        %474 = vmatmul.f32.gmra.mxu0 %v318
        %v475 = vpop.f32.mrf.mxu0
        %v476 = vadd.f32 %v374, %v475
        %477 = vmatmul.f32.gmra.mxu0 %v319
        %v478 = vpop.f32.mrf.mxu0
        %v479 = vadd.f32 %v374, %v478
        %480 = vmatmul.f32.gmra.mxu0 %v320
        %v481 = vpop.f32.mrf.mxu0
        %v482 = vadd.f32 %v374, %v481
        %483 = vmatmul.f32.gmra.mxu0 %v321
        %v484 = vpop.f32.mrf.mxu0
        %v485 = vadd.f32 %v374, %v484
        %486 = vmatmul.f32.gmra.mxu0 %v322
        %v487 = vpop.f32.mrf.mxu0
        %v488 = vadd.f32 %v374, %v487
        %489 = vmatmul.f32.gmra.mxu0 %v323
        %v490 = vpop.f32.mrf.mxu0
        %v491 = vadd.f32 %v374, %v490
        %492 = vdwg.mxu0
        %493 = vmatpush.msra.mxu0 %v370
        %494 = vmatpush.msra.mxu0 %v367
        %495 = vmatpush.msra.mxu0 %v364
        %496 = vmatpush.msra.mxu0 %v361
        %497 = vmatpush.msra.mxu0 %v358
        %498 = vmatpush.msra.mxu0 %v355
        %499 = vmatpush.msra.mxu0 %v352
        %500 = vmatpush.msra.mxu0 %v349
        %501 = vmatpush.msra.mxu0 %v346
        %502 = vmatpush.msra.mxu0 %v343
        %503 = vmatpush.msra.mxu0 %v340
        %504 = vmatpush.msra.mxu0 %v337
        %505 = vmatpush.msra.mxu0 %v334
        %506 = vmatpush.msra.mxu0 %v331
        %507 = vmatpush.msra.mxu0 %v328
        %508 = vmatpush.msra.mxu0 %v325
        %509 = vmatmul.f32.gmra.mxu0 %v292
        %v510 = vpop.f32.mrf.mxu0
        %v511 = vadd.f32 %v375, %v510
        %512 = vmatmul.f32.gmra.mxu0 %v293
        %v513 = vpop.f32.mrf.mxu0
        %v514 = vadd.f32 %v375, %v513
        %515 = vmatmul.f32.gmra.mxu0 %v294
        %v516 = vpop.f32.mrf.mxu0
        %v517 = vadd.f32 %v375, %v516
        %518 = vmatmul.f32.gmra.mxu0 %v295
        %v519 = vpop.f32.mrf.mxu0
        %v520 = vadd.f32 %v375, %v519
        %521 = vmatmul.f32.gmra.mxu0 %v296
        %v522 = vpop.f32.mrf.mxu0
        %v523 = vadd.f32 %v375, %v522
        %524 = vmatmul.f32.gmra.mxu0 %v297
        %v525 = vpop.f32.mrf.mxu0
        %v526 = vadd.f32 %v375, %v525
        %527 = vmatmul.f32.gmra.mxu0 %v298
        %v528 = vpop.f32.mrf.mxu0
        %v529 = vadd.f32 %v375, %v528
        %530 = vmatmul.f32.gmra.mxu0 %v299
        %v531 = vpop.f32.mrf.mxu0
        %v532 = vadd.f32 %v375, %v531
        %533 = vmatmul.f32.gmra.mxu0 %v300
        %v534 = vpop.f32.mrf.mxu0
        %v535 = vadd.f32 %v375, %v534
        %536 = vmatmul.f32.gmra.mxu0 %v301
        %v537 = vpop.f32.mrf.mxu0
        %v538 = vadd.f32 %v375, %v537
        %539 = vmatmul.f32.gmra.mxu0 %v302
        %v540 = vpop.f32.mrf.mxu0
        %v541 = vadd.f32 %v375, %v540
        %542 = vmatmul.f32.gmra.mxu0 %v303
        %v543 = vpop.f32.mrf.mxu0
        %v544 = vadd.f32 %v375, %v543
        %545 = vmatmul.f32.gmra.mxu0 %v304
        %v546 = vpop.f32.mrf.mxu0
        %v547 = vadd.f32 %v375, %v546
        %548 = vmatmul.f32.gmra.mxu0 %v305
        %v549 = vpop.f32.mrf.mxu0
        %v550 = vadd.f32 %v375, %v549
        %551 = vmatmul.f32.gmra.mxu0 %v306
        %v552 = vpop.f32.mrf.mxu0
        %v553 = vadd.f32 %v375, %v552
        %554 = vmatmul.f32.gmra.mxu0 %v307
        %v555 = vpop.f32.mrf.mxu0
        %v556 = vadd.f32 %v375, %v555
        %557 = vmatmul.f32.gmra.mxu0 %v308
        %v558 = vpop.f32.mrf.mxu0
        %v559 = vadd.f32 %v375, %v558
        %560 = vmatmul.f32.gmra.mxu0 %v309
        %v561 = vpop.f32.mrf.mxu0
        %v562 = vadd.f32 %v375, %v561
        %563 = vmatmul.f32.gmra.mxu0 %v310
        %v564 = vpop.f32.mrf.mxu0
        %v565 = vadd.f32 %v375, %v564
        %566 = vmatmul.f32.gmra.mxu0 %v311
        %v567 = vpop.f32.mrf.mxu0
        %v568 = vadd.f32 %v375, %v567
        %569 = vmatmul.f32.gmra.mxu0 %v312
        %v570 = vpop.f32.mrf.mxu0
        %v571 = vadd.f32 %v375, %v570
        %572 = vmatmul.f32.gmra.mxu0 %v313
        %v573 = vpop.f32.mrf.mxu0
        %v574 = vadd.f32 %v375, %v573
        %575 = vmatmul.f32.gmra.mxu0 %v314
        %v576 = vpop.f32.mrf.mxu0
        %v577 = vadd.f32 %v375, %v576
        %578 = vmatmul.f32.gmra.mxu0 %v315
        %v579 = vpop.f32.mrf.mxu0
        %v580 = vadd.f32 %v375, %v579
        %581 = vmatmul.f32.gmra.mxu0 %v316
        %v582 = vpop.f32.mrf.mxu0
        %v583 = vadd.f32 %v375, %v582
        %584 = vmatmul.f32.gmra.mxu0 %v317
        %v585 = vpop.f32.mrf.mxu0
        %v586 = vadd.f32 %v375, %v585
        %587 = vmatmul.f32.gmra.mxu0 %v318
        %v588 = vpop.f32.mrf.mxu0
        %v589 = vadd.f32 %v375, %v588
        %590 = vmatmul.f32.gmra.mxu0 %v319
        %v591 = vpop.f32.mrf.mxu0
        %v592 = vadd.f32 %v375, %v591
        %593 = vmatmul.f32.gmra.mxu0 %v320
        %v594 = vpop.f32.mrf.mxu0
        %v595 = vadd.f32 %v375, %v594
        %596 = vmatmul.f32.gmra.mxu0 %v321
        %v597 = vpop.f32.mrf.mxu0
        %v598 = vadd.f32 %v375, %v597
        %599 = vmatmul.f32.gmra.mxu0 %v322
        %v600 = vpop.f32.mrf.mxu0
        %v601 = vadd.f32 %v375, %v600
        %602 = vmatmul.f32.gmra.mxu0 %v323
        %v603 = vpop.f32.mrf.mxu0
        %v604 = vadd.f32 %v375, %v603
        %605 = vdwg.mxu0
        %606 = vmatpush.msra.mxu0 %v371
        %607 = vmatpush.msra.mxu0 %v368
        %608 = vmatpush.msra.mxu0 %v365
        %609 = vmatpush.msra.mxu0 %v362
        %610 = vmatpush.msra.mxu0 %v359
        %611 = vmatpush.msra.mxu0 %v356
        %612 = vmatpush.msra.mxu0 %v353
        %613 = vmatpush.msra.mxu0 %v350
        %614 = vmatpush.msra.mxu0 %v347
        %615 = vmatpush.msra.mxu0 %v344
        %616 = vmatpush.msra.mxu0 %v341
        %617 = vmatpush.msra.mxu0 %v338
        %618 = vmatpush.msra.mxu0 %v335
        %619 = vmatpush.msra.mxu0 %v332
        %620 = vmatpush.msra.mxu0 %v329
        %621 = vmatpush.msra.mxu0 %v326
        %622 = vmatmul.f32.gmra.mxu0 %v292
        %v623 = vpop.f32.mrf.mxu0
        %v624 = vadd.f32 %v376, %v623
        %625 = vmatmul.f32.gmra.mxu0 %v293
        %v626 = vpop.f32.mrf.mxu0
        %v627 = vadd.f32 %v376, %v626
        %628 = vmatmul.f32.gmra.mxu0 %v294
        %v629 = vpop.f32.mrf.mxu0
        %v630 = vadd.f32 %v376, %v629
        %631 = vmatmul.f32.gmra.mxu0 %v295
        %v632 = vpop.f32.mrf.mxu0
        %v633 = vadd.f32 %v376, %v632
        %634 = vmatmul.f32.gmra.mxu0 %v296
        %v635 = vpop.f32.mrf.mxu0
        %v636 = vadd.f32 %v376, %v635
        %637 = vmatmul.f32.gmra.mxu0 %v297
        %v638 = vpop.f32.mrf.mxu0
        %v639 = vadd.f32 %v376, %v638
        %640 = vmatmul.f32.gmra.mxu0 %v298
        %v641 = vpop.f32.mrf.mxu0
        %v642 = vadd.f32 %v376, %v641
        %643 = vmatmul.f32.gmra.mxu0 %v299
        %v644 = vpop.f32.mrf.mxu0
        %v645 = vadd.f32 %v376, %v644
        %646 = vmatmul.f32.gmra.mxu0 %v300
        %v647 = vpop.f32.mrf.mxu0
        %v648 = vadd.f32 %v376, %v647
        %649 = vmatmul.f32.gmra.mxu0 %v301
        %v650 = vpop.f32.mrf.mxu0
        %v651 = vadd.f32 %v376, %v650
        %652 = vmatmul.f32.gmra.mxu0 %v302
        %v653 = vpop.f32.mrf.mxu0
        %v654 = vadd.f32 %v376, %v653
        %655 = vmatmul.f32.gmra.mxu0 %v303
        %v656 = vpop.f32.mrf.mxu0
        %v657 = vadd.f32 %v376, %v656
        %658 = vmatmul.f32.gmra.mxu0 %v304
        %v659 = vpop.f32.mrf.mxu0
        %v660 = vadd.f32 %v376, %v659
        %661 = vmatmul.f32.gmra.mxu0 %v305
        %v662 = vpop.f32.mrf.mxu0
        %v663 = vadd.f32 %v376, %v662
        %664 = vmatmul.f32.gmra.mxu0 %v306
        %v665 = vpop.f32.mrf.mxu0
        %v666 = vadd.f32 %v376, %v665
        %667 = vmatmul.f32.gmra.mxu0 %v307
        %v668 = vpop.f32.mrf.mxu0
        %v669 = vadd.f32 %v376, %v668
        %670 = vmatmul.f32.gmra.mxu0 %v308
        %v671 = vpop.f32.mrf.mxu0
        %v672 = vadd.f32 %v376, %v671
        %673 = vmatmul.f32.gmra.mxu0 %v309
        %v674 = vpop.f32.mrf.mxu0
        %v675 = vadd.f32 %v376, %v674
        %676 = vmatmul.f32.gmra.mxu0 %v310
        %v677 = vpop.f32.mrf.mxu0
        %v678 = vadd.f32 %v376, %v677
        %679 = vmatmul.f32.gmra.mxu0 %v311
        %v680 = vpop.f32.mrf.mxu0
        %v681 = vadd.f32 %v376, %v680
        %682 = vmatmul.f32.gmra.mxu0 %v312
        %v683 = vpop.f32.mrf.mxu0
        %v684 = vadd.f32 %v376, %v683
        %685 = vmatmul.f32.gmra.mxu0 %v313
        %v686 = vpop.f32.mrf.mxu0
        %v687 = vadd.f32 %v376, %v686
        %688 = vmatmul.f32.gmra.mxu0 %v314
        %v689 = vpop.f32.mrf.mxu0
        %v690 = vadd.f32 %v376, %v689
        %691 = vmatmul.f32.gmra.mxu0 %v315
        %v692 = vpop.f32.mrf.mxu0
        %v693 = vadd.f32 %v376, %v692
        %694 = vmatmul.f32.gmra.mxu0 %v316
        %v695 = vpop.f32.mrf.mxu0
        %v696 = vadd.f32 %v376, %v695
        %697 = vmatmul.f32.gmra.mxu0 %v317
        %v698 = vpop.f32.mrf.mxu0
        %v699 = vadd.f32 %v376, %v698
        %700 = vmatmul.f32.gmra.mxu0 %v318
        %v701 = vpop.f32.mrf.mxu0
        %v702 = vadd.f32 %v376, %v701
        %703 = vmatmul.f32.gmra.mxu0 %v319
        %v704 = vpop.f32.mrf.mxu0
        %v705 = vadd.f32 %v376, %v704
        %706 = vmatmul.f32.gmra.mxu0 %v320
        %v707 = vpop.f32.mrf.mxu0
        %v708 = vadd.f32 %v376, %v707
        %709 = vmatmul.f32.gmra.mxu0 %v321
        %v710 = vpop.f32.mrf.mxu0
        %v711 = vadd.f32 %v376, %v710
        %712 = vmatmul.f32.gmra.mxu0 %v322
        %v713 = vpop.f32.mrf.mxu0
        %v714 = vadd.f32 %v376, %v713
        %715 = vmatmul.f32.gmra.mxu0 %v323
        %v716 = vpop.f32.mrf.mxu0
        %v717 = vadd.f32 %v376, %v716
        %718 = vdwg.mxu0
        %719 = vmatpush.xpose.msra.mxu0 %v556
        %720 = vmatpush.xpose.msra.mxu0 %v553
        %721 = vmatpush.xpose.msra.mxu0 %v550
        %722 = vmatpush.xpose.msra.mxu0 %v547
        %723 = vmatpush.xpose.msra.mxu0 %v544
        %724 = vmatpush.xpose.msra.mxu0 %v541
        %725 = vmatpush.xpose.msra.mxu0 %v538
        %726 = vmatpush.xpose.msra.mxu0 %v535
        %727 = vmatpush.xpose.msra.mxu0 %v532
        %728 = vmatpush.xpose.msra.mxu0 %v529
        %729 = vmatpush.xpose.msra.mxu0 %v526
        %730 = vmatpush.xpose.msra.mxu0 %v523
        %731 = vmatpush.xpose.msra.mxu0 %v520
        %732 = vmatpush.xpose.msra.mxu0 %v517
        %733 = vmatpush.xpose.msra.mxu0 %v514
        %734 = vmatpush.xpose.msra.mxu0 %v511
        %735 = vmatmul.f32.gmra.mxu0 %v398
        %v736 = vpop.f32.mrf.mxu0
        %v737 = vadd.f32 0.0, %v736
        %738 = vmatmul.f32.gmra.mxu0 %v401
        %v739 = vpop.f32.mrf.mxu0
        %v740 = vadd.f32 0.0, %v739
        %741 = vmatmul.f32.gmra.mxu0 %v404
        %v742 = vpop.f32.mrf.mxu0
        %v743 = vadd.f32 0.0, %v742
        %744 = vmatmul.f32.gmra.mxu0 %v407
        %v745 = vpop.f32.mrf.mxu0
        %v746 = vadd.f32 0.0, %v745
        %747 = vmatmul.f32.gmra.mxu0 %v410
        %v748 = vpop.f32.mrf.mxu0
        %v749 = vadd.f32 0.0, %v748
        %750 = vmatmul.f32.gmra.mxu0 %v413
        %v751 = vpop.f32.mrf.mxu0
        %v752 = vadd.f32 0.0, %v751
        %753 = vmatmul.f32.gmra.mxu0 %v416
        %v754 = vpop.f32.mrf.mxu0
        %v755 = vadd.f32 0.0, %v754
        %756 = vmatmul.f32.gmra.mxu0 %v419
        %v757 = vpop.f32.mrf.mxu0
        %v758 = vadd.f32 0.0, %v757
        %759 = vmatmul.f32.gmra.mxu0 %v422
        %v760 = vpop.f32.mrf.mxu0
        %v761 = vadd.f32 0.0, %v760
        %762 = vmatmul.f32.gmra.mxu0 %v425
        %v763 = vpop.f32.mrf.mxu0
        %v764 = vadd.f32 0.0, %v763
        %765 = vmatmul.f32.gmra.mxu0 %v428
        %v766 = vpop.f32.mrf.mxu0
        %v767 = vadd.f32 0.0, %v766
        %768 = vmatmul.f32.gmra.mxu0 %v431
        %v769 = vpop.f32.mrf.mxu0
        %v770 = vadd.f32 0.0, %v769
        %771 = vmatmul.f32.gmra.mxu0 %v434
        %v772 = vpop.f32.mrf.mxu0
        %v773 = vadd.f32 0.0, %v772
        %774 = vmatmul.f32.gmra.mxu0 %v437
        %v775 = vpop.f32.mrf.mxu0
        %v776 = vadd.f32 0.0, %v775
        %777 = vmatmul.f32.gmra.mxu0 %v440
        %v778 = vpop.f32.mrf.mxu0
        %v779 = vadd.f32 0.0, %v778
        %780 = vmatmul.f32.gmra.mxu0 %v443
        %v781 = vpop.f32.mrf.mxu0
        %v782 = vadd.f32 0.0, %v781
        %783 = vmatmul.f32.gmra.mxu0 %v446
        %v784 = vpop.f32.mrf.mxu0
        %v785 = vadd.f32 0.0, %v784
        %786 = vmatmul.f32.gmra.mxu0 %v449
        %v787 = vpop.f32.mrf.mxu0
        %v788 = vadd.f32 0.0, %v787
        %789 = vmatmul.f32.gmra.mxu0 %v452
        %v790 = vpop.f32.mrf.mxu0
        %v791 = vadd.f32 0.0, %v790
        %792 = vmatmul.f32.gmra.mxu0 %v455
        %v793 = vpop.f32.mrf.mxu0
        %v794 = vadd.f32 0.0, %v793
        %795 = vmatmul.f32.gmra.mxu0 %v458
        %v796 = vpop.f32.mrf.mxu0
        %v797 = vadd.f32 0.0, %v796
        %798 = vmatmul.f32.gmra.mxu0 %v461
        %v799 = vpop.f32.mrf.mxu0
        %v800 = vadd.f32 0.0, %v799
        %801 = vmatmul.f32.gmra.mxu0 %v464
        %v802 = vpop.f32.mrf.mxu0
        %v803 = vadd.f32 0.0, %v802
        %804 = vmatmul.f32.gmra.mxu0 %v467
        %v805 = vpop.f32.mrf.mxu0
        %v806 = vadd.f32 0.0, %v805
        %807 = vmatmul.f32.gmra.mxu0 %v470
        %v808 = vpop.f32.mrf.mxu0
        %v809 = vadd.f32 0.0, %v808
        %810 = vmatmul.f32.gmra.mxu0 %v473
        %v811 = vpop.f32.mrf.mxu0
        %v812 = vadd.f32 0.0, %v811
        %813 = vmatmul.f32.gmra.mxu0 %v476
        %v814 = vpop.f32.mrf.mxu0
        %v815 = vadd.f32 0.0, %v814
        %816 = vmatmul.f32.gmra.mxu0 %v479
        %v817 = vpop.f32.mrf.mxu0
        %v818 = vadd.f32 0.0, %v817
        %819 = vmatmul.f32.gmra.mxu0 %v482
        %v820 = vpop.f32.mrf.mxu0
        %v821 = vadd.f32 0.0, %v820
        %822 = vmatmul.f32.gmra.mxu0 %v485
        %v823 = vpop.f32.mrf.mxu0
        %v824 = vadd.f32 0.0, %v823
        %825 = vmatmul.f32.gmra.mxu0 %v488
        %v826 = vpop.f32.mrf.mxu0
        %v827 = vadd.f32 0.0, %v826
        %828 = vmatmul.f32.gmra.mxu0 %v491
        %v829 = vpop.f32.mrf.mxu0
        %v830 = vadd.f32 0.0, %v829
        %831 = vdwg.mxu0
        %832 = vmatpush.xpose.msra.mxu0 %v604
        %833 = vmatpush.xpose.msra.mxu0 %v601
        %834 = vmatpush.xpose.msra.mxu0 %v598
        %835 = vmatpush.xpose.msra.mxu0 %v595
        %836 = vmatpush.xpose.msra.mxu0 %v592
        %837 = vmatpush.xpose.msra.mxu0 %v589
        %838 = vmatpush.xpose.msra.mxu0 %v586
        %839 = vmatpush.xpose.msra.mxu0 %v583
        %840 = vmatpush.xpose.msra.mxu0 %v580
        %841 = vmatpush.xpose.msra.mxu0 %v577
        %842 = vmatpush.xpose.msra.mxu0 %v574
        %843 = vmatpush.xpose.msra.mxu0 %v571
        %844 = vmatpush.xpose.msra.mxu0 %v568
        %845 = vmatpush.xpose.msra.mxu0 %v565
        %846 = vmatpush.xpose.msra.mxu0 %v562
        %847 = vmatpush.xpose.msra.mxu0 %v559
        %848 = vmatmul.f32.gmra.mxu0 %v398
        %v849 = vpop.f32.mrf.mxu0
        %v850 = vadd.f32 0.0, %v849
        %851 = vmatmul.f32.gmra.mxu0 %v401
        %v852 = vpop.f32.mrf.mxu0
        %v853 = vadd.f32 0.0, %v852
        %854 = vmatmul.f32.gmra.mxu0 %v404
        %v855 = vpop.f32.mrf.mxu0
        %v856 = vadd.f32 0.0, %v855
        %857 = vmatmul.f32.gmra.mxu0 %v407
        %v858 = vpop.f32.mrf.mxu0
        %v859 = vadd.f32 0.0, %v858
        %860 = vmatmul.f32.gmra.mxu0 %v410
        %v861 = vpop.f32.mrf.mxu0
        %v862 = vadd.f32 0.0, %v861
        %863 = vmatmul.f32.gmra.mxu0 %v413
        %v864 = vpop.f32.mrf.mxu0
        %v865 = vadd.f32 0.0, %v864
        %866 = vmatmul.f32.gmra.mxu0 %v416
        %v867 = vpop.f32.mrf.mxu0
        %v868 = vadd.f32 0.0, %v867
        %869 = vmatmul.f32.gmra.mxu0 %v419
        %v870 = vpop.f32.mrf.mxu0
        %v871 = vadd.f32 0.0, %v870
        %872 = vmatmul.f32.gmra.mxu0 %v422
        %v873 = vpop.f32.mrf.mxu0
        %v874 = vadd.f32 0.0, %v873
        %875 = vmatmul.f32.gmra.mxu0 %v425
        %v876 = vpop.f32.mrf.mxu0
        %v877 = vadd.f32 0.0, %v876
        %878 = vmatmul.f32.gmra.mxu0 %v428
        %v879 = vpop.f32.mrf.mxu0
        %v880 = vadd.f32 0.0, %v879
        %881 = vmatmul.f32.gmra.mxu0 %v431
        %v882 = vpop.f32.mrf.mxu0
        %v883 = vadd.f32 0.0, %v882
        %884 = vmatmul.f32.gmra.mxu0 %v434
        %v885 = vpop.f32.mrf.mxu0
        %v886 = vadd.f32 0.0, %v885
        %887 = vmatmul.f32.gmra.mxu0 %v437
        %v888 = vpop.f32.mrf.mxu0
        %v889 = vadd.f32 0.0, %v888
        %890 = vmatmul.f32.gmra.mxu0 %v440
        %v891 = vpop.f32.mrf.mxu0
        %v892 = vadd.f32 0.0, %v891
        %893 = vmatmul.f32.gmra.mxu0 %v443
        %v894 = vpop.f32.mrf.mxu0
        %v895 = vadd.f32 0.0, %v894
        %896 = vmatmul.f32.gmra.mxu0 %v446
        %v897 = vpop.f32.mrf.mxu0
        %v898 = vadd.f32 0.0, %v897
        %899 = vmatmul.f32.gmra.mxu0 %v449
        %v900 = vpop.f32.mrf.mxu0
        %v901 = vadd.f32 0.0, %v900
        %902 = vmatmul.f32.gmra.mxu0 %v452
        %v903 = vpop.f32.mrf.mxu0
        %v904 = vadd.f32 0.0, %v903
        %905 = vmatmul.f32.gmra.mxu0 %v455
        %v906 = vpop.f32.mrf.mxu0
        %v907 = vadd.f32 0.0, %v906
        %908 = vmatmul.f32.gmra.mxu0 %v458
        %v909 = vpop.f32.mrf.mxu0
        %v910 = vadd.f32 0.0, %v909
        %911 = vmatmul.f32.gmra.mxu0 %v461
        %v912 = vpop.f32.mrf.mxu0
        %v913 = vadd.f32 0.0, %v912
        %914 = vmatmul.f32.gmra.mxu0 %v464
        %v915 = vpop.f32.mrf.mxu0
        %v916 = vadd.f32 0.0, %v915
        %917 = vmatmul.f32.gmra.mxu0 %v467
        %v918 = vpop.f32.mrf.mxu0
        %v919 = vadd.f32 0.0, %v918
        %920 = vmatmul.f32.gmra.mxu0 %v470
        %v921 = vpop.f32.mrf.mxu0
        %v922 = vadd.f32 0.0, %v921
        %923 = vmatmul.f32.gmra.mxu0 %v473
        %v924 = vpop.f32.mrf.mxu0
        %v925 = vadd.f32 0.0, %v924
        %926 = vmatmul.f32.gmra.mxu0 %v476
        %v927 = vpop.f32.mrf.mxu0
        %v928 = vadd.f32 0.0, %v927
        %929 = vmatmul.f32.gmra.mxu0 %v479
        %v930 = vpop.f32.mrf.mxu0
        %v931 = vadd.f32 0.0, %v930
        %932 = vmatmul.f32.gmra.mxu0 %v482
        %v933 = vpop.f32.mrf.mxu0
        %v934 = vadd.f32 0.0, %v933
        %935 = vmatmul.f32.gmra.mxu0 %v485
        %v936 = vpop.f32.mrf.mxu0
        %v937 = vadd.f32 0.0, %v936
        %938 = vmatmul.f32.gmra.mxu0 %v488
        %v939 = vpop.f32.mrf.mxu0
        %v940 = vadd.f32 0.0, %v939
        %941 = vmatmul.f32.gmra.mxu0 %v491
        %v942 = vpop.f32.mrf.mxu0
        %v943 = vadd.f32 0.0, %v942
        %944 = vdwg.mxu0
        %v945 = vmax.f32 %v737, %v850
        %946 = vmax.xlane.f32.xlu0 %v945
        %v947 = vpop.xlane.xlu0 %946
        %v948 = vmax.f32 %v740, %v853
        %949 = vmax.xlane.f32.xlu0 %v948
        %v950 = vpop.xlane.xlu0 %949
        %v951 = vmax.f32 %v743, %v856
        %952 = vmax.xlane.f32.xlu0 %v951
        %v953 = vpop.xlane.xlu0 %952
        %v954 = vmax.f32 %v746, %v859
        %955 = vmax.xlane.f32.xlu0 %v954
        %v956 = vpop.xlane.xlu0 %955
        %v957 = vmax.f32 %v749, %v862
        %958 = vmax.xlane.f32.xlu0 %v957
        %v959 = vpop.xlane.xlu0 %958
        %v960 = vmax.f32 %v752, %v865
        %961 = vmax.xlane.f32.xlu0 %v960
        %v962 = vpop.xlane.xlu0 %961
        %v963 = vmax.f32 %v755, %v868
        %964 = vmax.xlane.f32.xlu0 %v963
        %v965 = vpop.xlane.xlu0 %964
        %v966 = vmax.f32 %v758, %v871
        %967 = vmax.xlane.f32.xlu0 %v966
        %v968 = vpop.xlane.xlu0 %967
        %v969 = vmax.f32 %v761, %v874
        %970 = vmax.xlane.f32.xlu0 %v969
        %v971 = vpop.xlane.xlu0 %970
        %v972 = vmax.f32 %v764, %v877
        %973 = vmax.xlane.f32.xlu0 %v972
        %v974 = vpop.xlane.xlu0 %973
        %v975 = vmax.f32 %v767, %v880
        %976 = vmax.xlane.f32.xlu0 %v975
        %v977 = vpop.xlane.xlu0 %976
        %v978 = vmax.f32 %v770, %v883
        %979 = vmax.xlane.f32.xlu0 %v978
        %v980 = vpop.xlane.xlu0 %979
        %v981 = vmax.f32 %v773, %v886
        %982 = vmax.xlane.f32.xlu0 %v981
        %v983 = vpop.xlane.xlu0 %982
        %v984 = vmax.f32 %v776, %v889
        %985 = vmax.xlane.f32.xlu0 %v984
        %v986 = vpop.xlane.xlu0 %985
        %v987 = vmax.f32 %v779, %v892
        %988 = vmax.xlane.f32.xlu0 %v987
        %v989 = vpop.xlane.xlu0 %988
        %v990 = vmax.f32 %v782, %v895
        %991 = vmax.xlane.f32.xlu0 %v990
        %v992 = vpop.xlane.xlu0 %991
        %v993 = vmax.f32 %v785, %v898
        %994 = vmax.xlane.f32.xlu0 %v993
        %v995 = vpop.xlane.xlu0 %994
        %v996 = vmax.f32 %v788, %v901
        %997 = vmax.xlane.f32.xlu0 %v996
        %v998 = vpop.xlane.xlu0 %997
        %v999 = vmax.f32 %v791, %v904
        %1000 = vmax.xlane.f32.xlu0 %v999
        %v1001 = vpop.xlane.xlu0 %1000
        %v1002 = vmax.f32 %v794, %v907
        %1003 = vmax.xlane.f32.xlu0 %v1002
        %v1004 = vpop.xlane.xlu0 %1003
        %v1005 = vmax.f32 %v797, %v910
        %1006 = vmax.xlane.f32.xlu0 %v1005
        %v1007 = vpop.xlane.xlu0 %1006
        %v1008 = vmax.f32 %v800, %v913
        %1009 = vmax.xlane.f32.xlu0 %v1008
        %v1010 = vpop.xlane.xlu0 %1009
        %v1011 = vmax.f32 %v803, %v916
        %1012 = vmax.xlane.f32.xlu0 %v1011
        %v1013 = vpop.xlane.xlu0 %1012
        %v1014 = vmax.f32 %v806, %v919
        %1015 = vmax.xlane.f32.xlu0 %v1014
        %v1016 = vpop.xlane.xlu0 %1015
        %v1017 = vmax.f32 %v809, %v922
        %1018 = vmax.xlane.f32.xlu0 %v1017
        %v1019 = vpop.xlane.xlu0 %1018
        %v1020 = vmax.f32 %v812, %v925
        %1021 = vmax.xlane.f32.xlu0 %v1020
        %v1022 = vpop.xlane.xlu0 %1021
        %v1023 = vmax.f32 %v815, %v928
        %1024 = vmax.xlane.f32.xlu0 %v1023
        %v1025 = vpop.xlane.xlu0 %1024
        %v1026 = vmax.f32 %v818, %v931
        %1027 = vmax.xlane.f32.xlu0 %v1026
        %v1028 = vpop.xlane.xlu0 %1027
        %v1029 = vmax.f32 %v821, %v934
        %1030 = vmax.xlane.f32.xlu0 %v1029
        %v1031 = vpop.xlane.xlu0 %1030
        %v1032 = vmax.f32 %v824, %v937
        %1033 = vmax.xlane.f32.xlu0 %v1032
        %v1034 = vpop.xlane.xlu0 %1033
        %v1035 = vmax.f32 %v827, %v940
        %1036 = vmax.xlane.f32.xlu0 %v1035
        %v1037 = vpop.xlane.xlu0 %1036
        %v1038 = vmax.f32 %v830, %v943
        %1039 = vmax.xlane.f32.xlu0 %v1038
        %v1040 = vpop.xlane.xlu0 %1039
        %v1041 = vsub.f32 %v737, %v947
        %v1042 = vsub.f32 %v850, %v947
        %v1043 = vsub.f32 %v740, %v950
        %v1044 = vsub.f32 %v853, %v950
        %v1045 = vsub.f32 %v743, %v953
        %v1046 = vsub.f32 %v856, %v953
        %v1047 = vsub.f32 %v746, %v956
        %v1048 = vsub.f32 %v859, %v956
        %v1049 = vsub.f32 %v749, %v959
        %v1050 = vsub.f32 %v862, %v959
        %v1051 = vsub.f32 %v752, %v962
        %v1052 = vsub.f32 %v865, %v962
        %v1053 = vsub.f32 %v755, %v965
        %v1054 = vsub.f32 %v868, %v965
        %v1055 = vsub.f32 %v758, %v968
        %v1056 = vsub.f32 %v871, %v968
        %v1057 = vsub.f32 %v761, %v971
        %v1058 = vsub.f32 %v874, %v971
        %v1059 = vsub.f32 %v764, %v974
        %v1060 = vsub.f32 %v877, %v974
        %v1061 = vsub.f32 %v767, %v977
        %v1062 = vsub.f32 %v880, %v977
        %v1063 = vsub.f32 %v770, %v980
        %v1064 = vsub.f32 %v883, %v980
        %v1065 = vsub.f32 %v773, %v983
        %v1066 = vsub.f32 %v886, %v983
        %v1067 = vsub.f32 %v776, %v986
        %v1068 = vsub.f32 %v889, %v986
        %v1069 = vsub.f32 %v779, %v989
        %v1070 = vsub.f32 %v892, %v989
        %v1071 = vsub.f32 %v782, %v992
        %v1072 = vsub.f32 %v895, %v992
        %v1073 = vsub.f32 %v785, %v995
        %v1074 = vsub.f32 %v898, %v995
        %v1075 = vsub.f32 %v788, %v998
        %v1076 = vsub.f32 %v901, %v998
        %v1077 = vsub.f32 %v791, %v1001
        %v1078 = vsub.f32 %v904, %v1001
        %v1079 = vsub.f32 %v794, %v1004
        %v1080 = vsub.f32 %v907, %v1004
        %v1081 = vsub.f32 %v797, %v1007
        %v1082 = vsub.f32 %v910, %v1007
        %v1083 = vsub.f32 %v800, %v1010
        %v1084 = vsub.f32 %v913, %v1010
        %v1085 = vsub.f32 %v803, %v1013
        %v1086 = vsub.f32 %v916, %v1013
        %v1087 = vsub.f32 %v806, %v1016
        %v1088 = vsub.f32 %v919, %v1016
        %v1089 = vsub.f32 %v809, %v1019
        %v1090 = vsub.f32 %v922, %v1019
        %v1091 = vsub.f32 %v812, %v1022
        %v1092 = vsub.f32 %v925, %v1022
        %v1093 = vsub.f32 %v815, %v1025
        %v1094 = vsub.f32 %v928, %v1025
        %v1095 = vsub.f32 %v818, %v1028
        %v1096 = vsub.f32 %v931, %v1028
        %v1097 = vsub.f32 %v821, %v1031
        %v1098 = vsub.f32 %v934, %v1031
        %v1099 = vsub.f32 %v824, %v1034
        %v1100 = vsub.f32 %v937, %v1034
        %v1101 = vsub.f32 %v827, %v1037
        %v1102 = vsub.f32 %v940, %v1037
        %v1103 = vsub.f32 %v830, %v1040
        %v1104 = vsub.f32 %v943, %v1040
        %v1105 = vmul.f32 %v1041, 1.442695
        %v1106 = vpow.pop %v1105
        %v1107 = vmul.f32 %v1042, 1.442695
        %v1108 = vpow.pop %v1107
        %v1109 = vmul.f32 %v1043, 1.442695
        %v1110 = vpow.pop %v1109
        %v1111 = vmul.f32 %v1044, 1.442695
        %v1112 = vpow.pop %v1111
        %v1113 = vmul.f32 %v1045, 1.442695
        %v1114 = vpow.pop %v1113
        %v1115 = vmul.f32 %v1046, 1.442695
        %v1116 = vpow.pop %v1115
        %v1117 = vmul.f32 %v1047, 1.442695
        %v1118 = vpow.pop %v1117
        %v1119 = vmul.f32 %v1048, 1.442695
        %v1120 = vpow.pop %v1119
        %v1121 = vmul.f32 %v1049, 1.442695
        %v1122 = vpow.pop %v1121
        %v1123 = vmul.f32 %v1050, 1.442695
        %v1124 = vpow.pop %v1123
        %v1125 = vmul.f32 %v1051, 1.442695
        %v1126 = vpow.pop %v1125
        %v1127 = vmul.f32 %v1052, 1.442695
        %v1128 = vpow.pop %v1127
        %v1129 = vmul.f32 %v1053, 1.442695
        %v1130 = vpow.pop %v1129
        %v1131 = vmul.f32 %v1054, 1.442695
        %v1132 = vpow.pop %v1131
        %v1133 = vmul.f32 %v1055, 1.442695
        %v1134 = vpow.pop %v1133
        %v1135 = vmul.f32 %v1056, 1.442695
        %v1136 = vpow.pop %v1135
        %v1137 = vmul.f32 %v1057, 1.442695
        %v1138 = vpow.pop %v1137
        %v1139 = vmul.f32 %v1058, 1.442695
        %v1140 = vpow.pop %v1139
        %v1141 = vmul.f32 %v1059, 1.442695
        %v1142 = vpow.pop %v1141
        %v1143 = vmul.f32 %v1060, 1.442695
        %v1144 = vpow.pop %v1143
        %v1145 = vmul.f32 %v1061, 1.442695
        %v1146 = vpow.pop %v1145
        %v1147 = vmul.f32 %v1062, 1.442695
        %v1148 = vpow.pop %v1147
        %v1149 = vmul.f32 %v1063, 1.442695
        %v1150 = vpow.pop %v1149
        %v1151 = vmul.f32 %v1064, 1.442695
        %v1152 = vpow.pop %v1151
        %v1153 = vmul.f32 %v1065, 1.442695
        %v1154 = vpow.pop %v1153
        %v1155 = vmul.f32 %v1066, 1.442695
        %v1156 = vpow.pop %v1155
        %v1157 = vmul.f32 %v1067, 1.442695
        %v1158 = vpow.pop %v1157
        %v1159 = vmul.f32 %v1068, 1.442695
        %v1160 = vpow.pop %v1159
        %v1161 = vmul.f32 %v1069, 1.442695
        %v1162 = vpow.pop %v1161
        %v1163 = vmul.f32 %v1070, 1.442695
        %v1164 = vpow.pop %v1163
        %v1165 = vmul.f32 %v1071, 1.442695
        %v1166 = vpow.pop %v1165
        %v1167 = vmul.f32 %v1072, 1.442695
        %v1168 = vpow.pop %v1167
        %v1169 = vmul.f32 %v1073, 1.442695
        %v1170 = vpow.pop %v1169
        %v1171 = vmul.f32 %v1074, 1.442695
        %v1172 = vpow.pop %v1171
        %v1173 = vmul.f32 %v1075, 1.442695
        %v1174 = vpow.pop %v1173
        %v1175 = vmul.f32 %v1076, 1.442695
        %v1176 = vpow.pop %v1175
        %v1177 = vmul.f32 %v1077, 1.442695
        %v1178 = vpow.pop %v1177
        %v1179 = vmul.f32 %v1078, 1.442695
        %v1180 = vpow.pop %v1179
        %v1181 = vmul.f32 %v1079, 1.442695
        %v1182 = vpow.pop %v1181
        %v1183 = vmul.f32 %v1080, 1.442695
        %v1184 = vpow.pop %v1183
        %v1185 = vmul.f32 %v1081, 1.442695
        %v1186 = vpow.pop %v1185
        %v1187 = vmul.f32 %v1082, 1.442695
        %v1188 = vpow.pop %v1187
        %v1189 = vmul.f32 %v1083, 1.442695
        %v1190 = vpow.pop %v1189
        %v1191 = vmul.f32 %v1084, 1.442695
        %v1192 = vpow.pop %v1191
        %v1193 = vmul.f32 %v1085, 1.442695
        %v1194 = vpow.pop %v1193
        %v1195 = vmul.f32 %v1086, 1.442695
        %v1196 = vpow.pop %v1195
        %v1197 = vmul.f32 %v1087, 1.442695
        %v1198 = vpow.pop %v1197
        %v1199 = vmul.f32 %v1088, 1.442695
        %v1200 = vpow.pop %v1199
        %v1201 = vmul.f32 %v1089, 1.442695
        %v1202 = vpow.pop %v1201
        %v1203 = vmul.f32 %v1090, 1.442695
        %v1204 = vpow.pop %v1203
        %v1205 = vmul.f32 %v1091, 1.442695
        %v1206 = vpow.pop %v1205
        %v1207 = vmul.f32 %v1092, 1.442695
        %v1208 = vpow.pop %v1207
        %v1209 = vmul.f32 %v1093, 1.442695
        %v1210 = vpow.pop %v1209
        %v1211 = vmul.f32 %v1094, 1.442695
        %v1212 = vpow.pop %v1211
        %v1213 = vmul.f32 %v1095, 1.442695
        %v1214 = vpow.pop %v1213
        %v1215 = vmul.f32 %v1096, 1.442695
        %v1216 = vpow.pop %v1215
        %v1217 = vmul.f32 %v1097, 1.442695
        %v1218 = vpow.pop %v1217
        %v1219 = vmul.f32 %v1098, 1.442695
        %v1220 = vpow.pop %v1219
        %v1221 = vmul.f32 %v1099, 1.442695
        %v1222 = vpow.pop %v1221
        %v1223 = vmul.f32 %v1100, 1.442695
        %v1224 = vpow.pop %v1223
        %v1225 = vmul.f32 %v1101, 1.442695
        %v1226 = vpow.pop %v1225
        %v1227 = vmul.f32 %v1102, 1.442695
        %v1228 = vpow.pop %v1227
        %v1229 = vmul.f32 %v1103, 1.442695
        %v1230 = vpow.pop %v1229
        %v1231 = vmul.f32 %v1104, 1.442695
        %v1232 = vpow.pop %v1231
        %v1233 = vadd.f32 %v1106, %v1108
        %1234 = vadd.xlane.f32.xlu0 %v1233
        %v1235 = vpop.xlane.xlu0 %1234
        %v1236 = vadd.f32 %v1110, %v1112
        %1237 = vadd.xlane.f32.xlu0 %v1236
        %v1238 = vpop.xlane.xlu0 %1237
        %v1239 = vadd.f32 %v1114, %v1116
        %1240 = vadd.xlane.f32.xlu0 %v1239
        %v1241 = vpop.xlane.xlu0 %1240
        %v1242 = vadd.f32 %v1118, %v1120
        %1243 = vadd.xlane.f32.xlu0 %v1242
        %v1244 = vpop.xlane.xlu0 %1243
        %v1245 = vadd.f32 %v1122, %v1124
        %1246 = vadd.xlane.f32.xlu0 %v1245
        %v1247 = vpop.xlane.xlu0 %1246
        %v1248 = vadd.f32 %v1126, %v1128
        %1249 = vadd.xlane.f32.xlu0 %v1248
        %v1250 = vpop.xlane.xlu0 %1249
        %v1251 = vadd.f32 %v1130, %v1132
        %1252 = vadd.xlane.f32.xlu0 %v1251
        %v1253 = vpop.xlane.xlu0 %1252
        %v1254 = vadd.f32 %v1134, %v1136
        %1255 = vadd.xlane.f32.xlu0 %v1254
        %v1256 = vpop.xlane.xlu0 %1255
        %v1257 = vadd.f32 %v1138, %v1140
        %1258 = vadd.xlane.f32.xlu0 %v1257
        %v1259 = vpop.xlane.xlu0 %1258
        %v1260 = vadd.f32 %v1142, %v1144
        %1261 = vadd.xlane.f32.xlu0 %v1260
        %v1262 = vpop.xlane.xlu0 %1261
        %v1263 = vadd.f32 %v1146, %v1148
        %1264 = vadd.xlane.f32.xlu0 %v1263
        %v1265 = vpop.xlane.xlu0 %1264
        %v1266 = vadd.f32 %v1150, %v1152
        %1267 = vadd.xlane.f32.xlu0 %v1266
        %v1268 = vpop.xlane.xlu0 %1267
        %v1269 = vadd.f32 %v1154, %v1156
        %1270 = vadd.xlane.f32.xlu0 %v1269
        %v1271 = vpop.xlane.xlu0 %1270
        %v1272 = vadd.f32 %v1158, %v1160
        %1273 = vadd.xlane.f32.xlu0 %v1272
        %v1274 = vpop.xlane.xlu0 %1273
        %v1275 = vadd.f32 %v1162, %v1164
        %1276 = vadd.xlane.f32.xlu0 %v1275
        %v1277 = vpop.xlane.xlu0 %1276
        %v1278 = vadd.f32 %v1166, %v1168
        %1279 = vadd.xlane.f32.xlu0 %v1278
        %v1280 = vpop.xlane.xlu0 %1279
        %v1281 = vadd.f32 %v1170, %v1172
        %1282 = vadd.xlane.f32.xlu0 %v1281
        %v1283 = vpop.xlane.xlu0 %1282
        %v1284 = vadd.f32 %v1174, %v1176
        %1285 = vadd.xlane.f32.xlu0 %v1284
        %v1286 = vpop.xlane.xlu0 %1285
        %v1287 = vadd.f32 %v1178, %v1180
        %1288 = vadd.xlane.f32.xlu0 %v1287
        %v1289 = vpop.xlane.xlu0 %1288
        %v1290 = vadd.f32 %v1182, %v1184
        %1291 = vadd.xlane.f32.xlu0 %v1290
        %v1292 = vpop.xlane.xlu0 %1291
        %v1293 = vadd.f32 %v1186, %v1188
        %1294 = vadd.xlane.f32.xlu0 %v1293
        %v1295 = vpop.xlane.xlu0 %1294
        %v1296 = vadd.f32 %v1190, %v1192
        %1297 = vadd.xlane.f32.xlu0 %v1296
        %v1298 = vpop.xlane.xlu0 %1297
        %v1299 = vadd.f32 %v1194, %v1196
        %1300 = vadd.xlane.f32.xlu0 %v1299
        %v1301 = vpop.xlane.xlu0 %1300
        %v1302 = vadd.f32 %v1198, %v1200
        %1303 = vadd.xlane.f32.xlu0 %v1302
        %v1304 = vpop.xlane.xlu0 %1303
        %v1305 = vadd.f32 %v1202, %v1204
        %1306 = vadd.xlane.f32.xlu0 %v1305
        %v1307 = vpop.xlane.xlu0 %1306
        %v1308 = vadd.f32 %v1206, %v1208
        %1309 = vadd.xlane.f32.xlu0 %v1308
        %v1310 = vpop.xlane.xlu0 %1309
        %v1311 = vadd.f32 %v1210, %v1212
        %1312 = vadd.xlane.f32.xlu0 %v1311
        %v1313 = vpop.xlane.xlu0 %1312
        %v1314 = vadd.f32 %v1214, %v1216
        %1315 = vadd.xlane.f32.xlu0 %v1314
        %v1316 = vpop.xlane.xlu0 %1315
        %v1317 = vadd.f32 %v1218, %v1220
        %1318 = vadd.xlane.f32.xlu0 %v1317
        %v1319 = vpop.xlane.xlu0 %1318
        %v1320 = vadd.f32 %v1222, %v1224
        %1321 = vadd.xlane.f32.xlu0 %v1320
        %v1322 = vpop.xlane.xlu0 %1321
        %v1323 = vadd.f32 %v1226, %v1228
        %1324 = vadd.xlane.f32.xlu0 %v1323
        %v1325 = vpop.xlane.xlu0 %1324
        %v1326 = vadd.f32 %v1230, %v1232
        %1327 = vadd.xlane.f32.xlu0 %v1326
        %v1328 = vpop.xlane.xlu0 %1327
        %v1329 = vrcp.pop %v1235
        %v1330 = vmul.f32 %v1235, %v1329
        %v1331 = vsub.f32 1.0, %v1330
        %v1332 = vmul.f32 %v1329, %v1331
        %v1333 = vadd.f32 %v1329, %v1332
        %vm1334 = vweird.f32 %v1235
        %vm1335 = vweird.f32 %v1329
        %vm1336 = vmor %vm1334, %vm1335
        %v1337 = vsel %vm1336, %v1329, %v1333
        %v1338 = vand.u32 2147483647, %v1235
        %vm1339 = vcmp.eq.f32.partialorder %v1338, 8.507059e+37
        %v1340 = vand.u32 %v1235, 2147483648
        %v1341 = vor.u32 1.1754944e-38, %v1340
        %v1342 = vsel %vm1339, %v1341, %v1337
        %v1343 = vrcp.pop %v1238
        %v1344 = vmul.f32 %v1238, %v1343
        %v1345 = vsub.f32 1.0, %v1344
        %v1346 = vmul.f32 %v1343, %v1345
        %v1347 = vadd.f32 %v1343, %v1346
        %vm1348 = vweird.f32 %v1238
        %vm1349 = vweird.f32 %v1343
        %vm1350 = vmor %vm1348, %vm1349
        %v1351 = vsel %vm1350, %v1343, %v1347
        %v1352 = vand.u32 2147483647, %v1238
        %vm1353 = vcmp.eq.f32.partialorder %v1352, 8.507059e+37
        %v1354 = vand.u32 %v1238, 2147483648
        %v1355 = vor.u32 1.1754944e-38, %v1354
        %v1356 = vsel %vm1353, %v1355, %v1351
        %v1357 = vrcp.pop %v1241
        %v1358 = vmul.f32 %v1241, %v1357
        %v1359 = vsub.f32 1.0, %v1358
        %v1360 = vmul.f32 %v1357, %v1359
        %v1361 = vadd.f32 %v1357, %v1360
        %vm1362 = vweird.f32 %v1241
        %vm1363 = vweird.f32 %v1357
        %vm1364 = vmor %vm1362, %vm1363
        %v1365 = vsel %vm1364, %v1357, %v1361
        %v1366 = vand.u32 2147483647, %v1241
        %vm1367 = vcmp.eq.f32.partialorder %v1366, 8.507059e+37
        %v1368 = vand.u32 %v1241, 2147483648
        %v1369 = vor.u32 1.1754944e-38, %v1368
        %v1370 = vsel %vm1367, %v1369, %v1365
        %v1371 = vrcp.pop %v1244
        %v1372 = vmul.f32 %v1244, %v1371
        %v1373 = vsub.f32 1.0, %v1372
        %v1374 = vmul.f32 %v1371, %v1373
        %v1375 = vadd.f32 %v1371, %v1374
        %vm1376 = vweird.f32 %v1244
        %vm1377 = vweird.f32 %v1371
        %vm1378 = vmor %vm1376, %vm1377
        %v1379 = vsel %vm1378, %v1371, %v1375
        %v1380 = vand.u32 2147483647, %v1244
        %vm1381 = vcmp.eq.f32.partialorder %v1380, 8.507059e+37
        %v1382 = vand.u32 %v1244, 2147483648
        %v1383 = vor.u32 1.1754944e-38, %v1382
        %v1384 = vsel %vm1381, %v1383, %v1379
        %v1385 = vrcp.pop %v1247
        %v1386 = vmul.f32 %v1247, %v1385
        %v1387 = vsub.f32 1.0, %v1386
        %v1388 = vmul.f32 %v1385, %v1387
        %v1389 = vadd.f32 %v1385, %v1388
        %vm1390 = vweird.f32 %v1247
        %vm1391 = vweird.f32 %v1385
        %vm1392 = vmor %vm1390, %vm1391
        %v1393 = vsel %vm1392, %v1385, %v1389
        %v1394 = vand.u32 2147483647, %v1247
        %vm1395 = vcmp.eq.f32.partialorder %v1394, 8.507059e+37
        %v1396 = vand.u32 %v1247, 2147483648
        %v1397 = vor.u32 1.1754944e-38, %v1396
        %v1398 = vsel %vm1395, %v1397, %v1393
        %v1399 = vrcp.pop %v1250
        %v1400 = vmul.f32 %v1250, %v1399
        %v1401 = vsub.f32 1.0, %v1400
        %v1402 = vmul.f32 %v1399, %v1401
        %v1403 = vadd.f32 %v1399, %v1402
        %vm1404 = vweird.f32 %v1250
        %vm1405 = vweird.f32 %v1399
        %vm1406 = vmor %vm1404, %vm1405
        %v1407 = vsel %vm1406, %v1399, %v1403
        %v1408 = vand.u32 2147483647, %v1250
        %vm1409 = vcmp.eq.f32.partialorder %v1408, 8.507059e+37
        %v1410 = vand.u32 %v1250, 2147483648
        %v1411 = vor.u32 1.1754944e-38, %v1410
        %v1412 = vsel %vm1409, %v1411, %v1407
        %v1413 = vrcp.pop %v1253
        %v1414 = vmul.f32 %v1253, %v1413
        %v1415 = vsub.f32 1.0, %v1414
        %v1416 = vmul.f32 %v1413, %v1415
        %v1417 = vadd.f32 %v1413, %v1416
        %vm1418 = vweird.f32 %v1253
        %vm1419 = vweird.f32 %v1413
        %vm1420 = vmor %vm1418, %vm1419
        %v1421 = vsel %vm1420, %v1413, %v1417
        %v1422 = vand.u32 2147483647, %v1253
        %vm1423 = vcmp.eq.f32.partialorder %v1422, 8.507059e+37
        %v1424 = vand.u32 %v1253, 2147483648
        %v1425 = vor.u32 1.1754944e-38, %v1424
        %v1426 = vsel %vm1423, %v1425, %v1421
        %v1427 = vrcp.pop %v1256
        %v1428 = vmul.f32 %v1256, %v1427
        %v1429 = vsub.f32 1.0, %v1428
        %v1430 = vmul.f32 %v1427, %v1429
        %v1431 = vadd.f32 %v1427, %v1430
        %vm1432 = vweird.f32 %v1256
        %vm1433 = vweird.f32 %v1427
        %vm1434 = vmor %vm1432, %vm1433
        %v1435 = vsel %vm1434, %v1427, %v1431
        %v1436 = vand.u32 2147483647, %v1256
        %vm1437 = vcmp.eq.f32.partialorder %v1436, 8.507059e+37
        %v1438 = vand.u32 %v1256, 2147483648
        %v1439 = vor.u32 1.1754944e-38, %v1438
        %v1440 = vsel %vm1437, %v1439, %v1435
        %v1441 = vrcp.pop %v1259
        %v1442 = vmul.f32 %v1259, %v1441
        %v1443 = vsub.f32 1.0, %v1442
        %v1444 = vmul.f32 %v1441, %v1443
        %v1445 = vadd.f32 %v1441, %v1444
        %vm1446 = vweird.f32 %v1259
        %vm1447 = vweird.f32 %v1441
        %vm1448 = vmor %vm1446, %vm1447
        %v1449 = vsel %vm1448, %v1441, %v1445
        %v1450 = vand.u32 2147483647, %v1259
        %vm1451 = vcmp.eq.f32.partialorder %v1450, 8.507059e+37
        %v1452 = vand.u32 %v1259, 2147483648
        %v1453 = vor.u32 1.1754944e-38, %v1452
        %v1454 = vsel %vm1451, %v1453, %v1449
        %v1455 = vrcp.pop %v1262
        %v1456 = vmul.f32 %v1262, %v1455
        %v1457 = vsub.f32 1.0, %v1456
        %v1458 = vmul.f32 %v1455, %v1457
        %v1459 = vadd.f32 %v1455, %v1458
        %vm1460 = vweird.f32 %v1262
        %vm1461 = vweird.f32 %v1455
        %vm1462 = vmor %vm1460, %vm1461
        %v1463 = vsel %vm1462, %v1455, %v1459
        %v1464 = vand.u32 2147483647, %v1262
        %vm1465 = vcmp.eq.f32.partialorder %v1464, 8.507059e+37
        %v1466 = vand.u32 %v1262, 2147483648
        %v1467 = vor.u32 1.1754944e-38, %v1466
        %v1468 = vsel %vm1465, %v1467, %v1463
        %v1469 = vrcp.pop %v1265
        %v1470 = vmul.f32 %v1265, %v1469
        %v1471 = vsub.f32 1.0, %v1470
        %v1472 = vmul.f32 %v1469, %v1471
        %v1473 = vadd.f32 %v1469, %v1472
        %vm1474 = vweird.f32 %v1265
        %vm1475 = vweird.f32 %v1469
        %vm1476 = vmor %vm1474, %vm1475
        %v1477 = vsel %vm1476, %v1469, %v1473
        %v1478 = vand.u32 2147483647, %v1265
        %vm1479 = vcmp.eq.f32.partialorder %v1478, 8.507059e+37
        %v1480 = vand.u32 %v1265, 2147483648
        %v1481 = vor.u32 1.1754944e-38, %v1480
        %v1482 = vsel %vm1479, %v1481, %v1477
        %v1483 = vrcp.pop %v1268
        %v1484 = vmul.f32 %v1268, %v1483
        %v1485 = vsub.f32 1.0, %v1484
        %v1486 = vmul.f32 %v1483, %v1485
        %v1487 = vadd.f32 %v1483, %v1486
        %vm1488 = vweird.f32 %v1268
        %vm1489 = vweird.f32 %v1483
        %vm1490 = vmor %vm1488, %vm1489
        %v1491 = vsel %vm1490, %v1483, %v1487
        %v1492 = vand.u32 2147483647, %v1268
        %vm1493 = vcmp.eq.f32.partialorder %v1492, 8.507059e+37
        %v1494 = vand.u32 %v1268, 2147483648
        %v1495 = vor.u32 1.1754944e-38, %v1494
        %v1496 = vsel %vm1493, %v1495, %v1491
        %v1497 = vrcp.pop %v1271
        %v1498 = vmul.f32 %v1271, %v1497
        %v1499 = vsub.f32 1.0, %v1498
        %v1500 = vmul.f32 %v1497, %v1499
        %v1501 = vadd.f32 %v1497, %v1500
        %vm1502 = vweird.f32 %v1271
        %vm1503 = vweird.f32 %v1497
        %vm1504 = vmor %vm1502, %vm1503
        %v1505 = vsel %vm1504, %v1497, %v1501
        %v1506 = vand.u32 2147483647, %v1271
        %vm1507 = vcmp.eq.f32.partialorder %v1506, 8.507059e+37
        %v1508 = vand.u32 %v1271, 2147483648
        %v1509 = vor.u32 1.1754944e-38, %v1508
        %v1510 = vsel %vm1507, %v1509, %v1505
        %v1511 = vrcp.pop %v1274
        %v1512 = vmul.f32 %v1274, %v1511
        %v1513 = vsub.f32 1.0, %v1512
        %v1514 = vmul.f32 %v1511, %v1513
        %v1515 = vadd.f32 %v1511, %v1514
        %vm1516 = vweird.f32 %v1274
        %vm1517 = vweird.f32 %v1511
        %vm1518 = vmor %vm1516, %vm1517
        %v1519 = vsel %vm1518, %v1511, %v1515
        %v1520 = vand.u32 2147483647, %v1274
        %vm1521 = vcmp.eq.f32.partialorder %v1520, 8.507059e+37
        %v1522 = vand.u32 %v1274, 2147483648
        %v1523 = vor.u32 1.1754944e-38, %v1522
        %v1524 = vsel %vm1521, %v1523, %v1519
        %v1525 = vrcp.pop %v1277
        %v1526 = vmul.f32 %v1277, %v1525
        %v1527 = vsub.f32 1.0, %v1526
        %v1528 = vmul.f32 %v1525, %v1527
        %v1529 = vadd.f32 %v1525, %v1528
        %vm1530 = vweird.f32 %v1277
        %vm1531 = vweird.f32 %v1525
        %vm1532 = vmor %vm1530, %vm1531
        %v1533 = vsel %vm1532, %v1525, %v1529
        %v1534 = vand.u32 2147483647, %v1277
        %vm1535 = vcmp.eq.f32.partialorder %v1534, 8.507059e+37
        %v1536 = vand.u32 %v1277, 2147483648
        %v1537 = vor.u32 1.1754944e-38, %v1536
        %v1538 = vsel %vm1535, %v1537, %v1533
        %v1539 = vrcp.pop %v1280
        %v1540 = vmul.f32 %v1280, %v1539
        %v1541 = vsub.f32 1.0, %v1540
        %v1542 = vmul.f32 %v1539, %v1541
        %v1543 = vadd.f32 %v1539, %v1542
        %vm1544 = vweird.f32 %v1280
        %vm1545 = vweird.f32 %v1539
        %vm1546 = vmor %vm1544, %vm1545
        %v1547 = vsel %vm1546, %v1539, %v1543
        %v1548 = vand.u32 2147483647, %v1280
        %vm1549 = vcmp.eq.f32.partialorder %v1548, 8.507059e+37
        %v1550 = vand.u32 %v1280, 2147483648
        %v1551 = vor.u32 1.1754944e-38, %v1550
        %v1552 = vsel %vm1549, %v1551, %v1547
        %v1553 = vrcp.pop %v1283
        %v1554 = vmul.f32 %v1283, %v1553
        %v1555 = vsub.f32 1.0, %v1554
        %v1556 = vmul.f32 %v1553, %v1555
        %v1557 = vadd.f32 %v1553, %v1556
        %vm1558 = vweird.f32 %v1283
        %vm1559 = vweird.f32 %v1553
        %vm1560 = vmor %vm1558, %vm1559
        %v1561 = vsel %vm1560, %v1553, %v1557
        %v1562 = vand.u32 2147483647, %v1283
        %vm1563 = vcmp.eq.f32.partialorder %v1562, 8.507059e+37
        %v1564 = vand.u32 %v1283, 2147483648
        %v1565 = vor.u32 1.1754944e-38, %v1564
        %v1566 = vsel %vm1563, %v1565, %v1561
        %v1567 = vrcp.pop %v1286
        %v1568 = vmul.f32 %v1286, %v1567
        %v1569 = vsub.f32 1.0, %v1568
        %v1570 = vmul.f32 %v1567, %v1569
        %v1571 = vadd.f32 %v1567, %v1570
        %vm1572 = vweird.f32 %v1286
        %vm1573 = vweird.f32 %v1567
        %vm1574 = vmor %vm1572, %vm1573
        %v1575 = vsel %vm1574, %v1567, %v1571
        %v1576 = vand.u32 2147483647, %v1286
        %vm1577 = vcmp.eq.f32.partialorder %v1576, 8.507059e+37
        %v1578 = vand.u32 %v1286, 2147483648
        %v1579 = vor.u32 1.1754944e-38, %v1578
        %v1580 = vsel %vm1577, %v1579, %v1575
        %v1581 = vrcp.pop %v1289
        %v1582 = vmul.f32 %v1289, %v1581
        %v1583 = vsub.f32 1.0, %v1582
        %v1584 = vmul.f32 %v1581, %v1583
        %v1585 = vadd.f32 %v1581, %v1584
        %vm1586 = vweird.f32 %v1289
        %vm1587 = vweird.f32 %v1581
        %vm1588 = vmor %vm1586, %vm1587
        %v1589 = vsel %vm1588, %v1581, %v1585
        %v1590 = vand.u32 2147483647, %v1289
        %vm1591 = vcmp.eq.f32.partialorder %v1590, 8.507059e+37
        %v1592 = vand.u32 %v1289, 2147483648
        %v1593 = vor.u32 1.1754944e-38, %v1592
        %v1594 = vsel %vm1591, %v1593, %v1589
        %v1595 = vrcp.pop %v1292
        %v1596 = vmul.f32 %v1292, %v1595
        %v1597 = vsub.f32 1.0, %v1596
        %v1598 = vmul.f32 %v1595, %v1597
        %v1599 = vadd.f32 %v1595, %v1598
        %vm1600 = vweird.f32 %v1292
        %vm1601 = vweird.f32 %v1595
        %vm1602 = vmor %vm1600, %vm1601
        %v1603 = vsel %vm1602, %v1595, %v1599
        %v1604 = vand.u32 2147483647, %v1292
        %vm1605 = vcmp.eq.f32.partialorder %v1604, 8.507059e+37
        %v1606 = vand.u32 %v1292, 2147483648
        %v1607 = vor.u32 1.1754944e-38, %v1606
        %v1608 = vsel %vm1605, %v1607, %v1603
        %v1609 = vrcp.pop %v1295
        %v1610 = vmul.f32 %v1295, %v1609
        %v1611 = vsub.f32 1.0, %v1610
        %v1612 = vmul.f32 %v1609, %v1611
        %v1613 = vadd.f32 %v1609, %v1612
        %vm1614 = vweird.f32 %v1295
        %vm1615 = vweird.f32 %v1609
        %vm1616 = vmor %vm1614, %vm1615
        %v1617 = vsel %vm1616, %v1609, %v1613
        %v1618 = vand.u32 2147483647, %v1295
        %vm1619 = vcmp.eq.f32.partialorder %v1618, 8.507059e+37
        %v1620 = vand.u32 %v1295, 2147483648
        %v1621 = vor.u32 1.1754944e-38, %v1620
        %v1622 = vsel %vm1619, %v1621, %v1617
        %v1623 = vrcp.pop %v1298
        %v1624 = vmul.f32 %v1298, %v1623
        %v1625 = vsub.f32 1.0, %v1624
        %v1626 = vmul.f32 %v1623, %v1625
        %v1627 = vadd.f32 %v1623, %v1626
        %vm1628 = vweird.f32 %v1298
        %vm1629 = vweird.f32 %v1623
        %vm1630 = vmor %vm1628, %vm1629
        %v1631 = vsel %vm1630, %v1623, %v1627
        %v1632 = vand.u32 2147483647, %v1298
        %vm1633 = vcmp.eq.f32.partialorder %v1632, 8.507059e+37
        %v1634 = vand.u32 %v1298, 2147483648
        %v1635 = vor.u32 1.1754944e-38, %v1634
        %v1636 = vsel %vm1633, %v1635, %v1631
        %v1637 = vrcp.pop %v1301
        %v1638 = vmul.f32 %v1301, %v1637
        %v1639 = vsub.f32 1.0, %v1638
        %v1640 = vmul.f32 %v1637, %v1639
        %v1641 = vadd.f32 %v1637, %v1640
        %vm1642 = vweird.f32 %v1301
        %vm1643 = vweird.f32 %v1637
        %vm1644 = vmor %vm1642, %vm1643
        %v1645 = vsel %vm1644, %v1637, %v1641
        %v1646 = vand.u32 2147483647, %v1301
        %vm1647 = vcmp.eq.f32.partialorder %v1646, 8.507059e+37
        %v1648 = vand.u32 %v1301, 2147483648
        %v1649 = vor.u32 1.1754944e-38, %v1648
        %v1650 = vsel %vm1647, %v1649, %v1645
        %v1651 = vrcp.pop %v1304
        %v1652 = vmul.f32 %v1304, %v1651
        %v1653 = vsub.f32 1.0, %v1652
        %v1654 = vmul.f32 %v1651, %v1653
        %v1655 = vadd.f32 %v1651, %v1654
        %vm1656 = vweird.f32 %v1304
        %vm1657 = vweird.f32 %v1651
        %vm1658 = vmor %vm1656, %vm1657
        %v1659 = vsel %vm1658, %v1651, %v1655
        %v1660 = vand.u32 2147483647, %v1304
        %vm1661 = vcmp.eq.f32.partialorder %v1660, 8.507059e+37
        %v1662 = vand.u32 %v1304, 2147483648
        %v1663 = vor.u32 1.1754944e-38, %v1662
        %v1664 = vsel %vm1661, %v1663, %v1659
        %v1665 = vrcp.pop %v1307
        %v1666 = vmul.f32 %v1307, %v1665
        %v1667 = vsub.f32 1.0, %v1666
        %v1668 = vmul.f32 %v1665, %v1667
        %v1669 = vadd.f32 %v1665, %v1668
        %vm1670 = vweird.f32 %v1307
        %vm1671 = vweird.f32 %v1665
        %vm1672 = vmor %vm1670, %vm1671
        %v1673 = vsel %vm1672, %v1665, %v1669
        %v1674 = vand.u32 2147483647, %v1307
        %vm1675 = vcmp.eq.f32.partialorder %v1674, 8.507059e+37
        %v1676 = vand.u32 %v1307, 2147483648
        %v1677 = vor.u32 1.1754944e-38, %v1676
        %v1678 = vsel %vm1675, %v1677, %v1673
        %v1679 = vrcp.pop %v1310
        %v1680 = vmul.f32 %v1310, %v1679
        %v1681 = vsub.f32 1.0, %v1680
        %v1682 = vmul.f32 %v1679, %v1681
        %v1683 = vadd.f32 %v1679, %v1682
        %vm1684 = vweird.f32 %v1310
        %vm1685 = vweird.f32 %v1679
        %vm1686 = vmor %vm1684, %vm1685
        %v1687 = vsel %vm1686, %v1679, %v1683
        %v1688 = vand.u32 2147483647, %v1310
        %vm1689 = vcmp.eq.f32.partialorder %v1688, 8.507059e+37
        %v1690 = vand.u32 %v1310, 2147483648
        %v1691 = vor.u32 1.1754944e-38, %v1690
        %v1692 = vsel %vm1689, %v1691, %v1687
        %v1693 = vrcp.pop %v1313
        %v1694 = vmul.f32 %v1313, %v1693
        %v1695 = vsub.f32 1.0, %v1694
        %v1696 = vmul.f32 %v1693, %v1695
        %v1697 = vadd.f32 %v1693, %v1696
        %vm1698 = vweird.f32 %v1313
        %vm1699 = vweird.f32 %v1693
        %vm1700 = vmor %vm1698, %vm1699
        %v1701 = vsel %vm1700, %v1693, %v1697
        %v1702 = vand.u32 2147483647, %v1313
        %vm1703 = vcmp.eq.f32.partialorder %v1702, 8.507059e+37
        %v1704 = vand.u32 %v1313, 2147483648
        %v1705 = vor.u32 1.1754944e-38, %v1704
        %v1706 = vsel %vm1703, %v1705, %v1701
        %v1707 = vrcp.pop %v1316
        %v1708 = vmul.f32 %v1316, %v1707
        %v1709 = vsub.f32 1.0, %v1708
        %v1710 = vmul.f32 %v1707, %v1709
        %v1711 = vadd.f32 %v1707, %v1710
        %vm1712 = vweird.f32 %v1316
        %vm1713 = vweird.f32 %v1707
        %vm1714 = vmor %vm1712, %vm1713
        %v1715 = vsel %vm1714, %v1707, %v1711
        %v1716 = vand.u32 2147483647, %v1316
        %vm1717 = vcmp.eq.f32.partialorder %v1716, 8.507059e+37
        %v1718 = vand.u32 %v1316, 2147483648
        %v1719 = vor.u32 1.1754944e-38, %v1718
        %v1720 = vsel %vm1717, %v1719, %v1715
        %v1721 = vrcp.pop %v1319
        %v1722 = vmul.f32 %v1319, %v1721
        %v1723 = vsub.f32 1.0, %v1722
        %v1724 = vmul.f32 %v1721, %v1723
        %v1725 = vadd.f32 %v1721, %v1724
        %vm1726 = vweird.f32 %v1319
        %vm1727 = vweird.f32 %v1721
        %vm1728 = vmor %vm1726, %vm1727
        %v1729 = vsel %vm1728, %v1721, %v1725
        %v1730 = vand.u32 2147483647, %v1319
        %vm1731 = vcmp.eq.f32.partialorder %v1730, 8.507059e+37
        %v1732 = vand.u32 %v1319, 2147483648
        %v1733 = vor.u32 1.1754944e-38, %v1732
        %v1734 = vsel %vm1731, %v1733, %v1729
        %v1735 = vrcp.pop %v1322
        %v1736 = vmul.f32 %v1322, %v1735
        %v1737 = vsub.f32 1.0, %v1736
        %v1738 = vmul.f32 %v1735, %v1737
        %v1739 = vadd.f32 %v1735, %v1738
        %vm1740 = vweird.f32 %v1322
        %vm1741 = vweird.f32 %v1735
        %vm1742 = vmor %vm1740, %vm1741
        %v1743 = vsel %vm1742, %v1735, %v1739
        %v1744 = vand.u32 2147483647, %v1322
        %vm1745 = vcmp.eq.f32.partialorder %v1744, 8.507059e+37
        %v1746 = vand.u32 %v1322, 2147483648
        %v1747 = vor.u32 1.1754944e-38, %v1746
        %v1748 = vsel %vm1745, %v1747, %v1743
        %v1749 = vrcp.pop %v1325
        %v1750 = vmul.f32 %v1325, %v1749
        %v1751 = vsub.f32 1.0, %v1750
        %v1752 = vmul.f32 %v1749, %v1751
        %v1753 = vadd.f32 %v1749, %v1752
        %vm1754 = vweird.f32 %v1325
        %vm1755 = vweird.f32 %v1749
        %vm1756 = vmor %vm1754, %vm1755
        %v1757 = vsel %vm1756, %v1749, %v1753
        %v1758 = vand.u32 2147483647, %v1325
        %vm1759 = vcmp.eq.f32.partialorder %v1758, 8.507059e+37
        %v1760 = vand.u32 %v1325, 2147483648
        %v1761 = vor.u32 1.1754944e-38, %v1760
        %v1762 = vsel %vm1759, %v1761, %v1757
        %v1763 = vrcp.pop %v1328
        %v1764 = vmul.f32 %v1328, %v1763
        %v1765 = vsub.f32 1.0, %v1764
        %v1766 = vmul.f32 %v1763, %v1765
        %v1767 = vadd.f32 %v1763, %v1766
        %vm1768 = vweird.f32 %v1328
        %vm1769 = vweird.f32 %v1763
        %vm1770 = vmor %vm1768, %vm1769
        %v1771 = vsel %vm1770, %v1763, %v1767
        %v1772 = vand.u32 2147483647, %v1328
        %vm1773 = vcmp.eq.f32.partialorder %v1772, 8.507059e+37
        %v1774 = vand.u32 %v1328, 2147483648
        %v1775 = vor.u32 1.1754944e-38, %v1774
        %v1776 = vsel %vm1773, %v1775, %v1771
        %1777 = vxpose.xlu0.b32.start [1/16] %v624, 128
        %1778 = vxpose.xlu0.b32.cont [2/16] %v627, 128
        %1779 = vxpose.xlu0.b32.cont [3/16] %v630, 128
        %1780 = vxpose.xlu0.b32.cont [4/16] %v633, 128
        %1781 = vxpose.xlu0.b32.cont [5/16] %v636, 128
        %1782 = vxpose.xlu0.b32.cont [6/16] %v639, 128
        %1783 = vxpose.xlu0.b32.cont [7/16] %v642, 128
        %1784 = vxpose.xlu0.b32.cont [8/16] %v645, 128
        %1785 = vxpose.xlu0.b32.cont [9/16] %v648, 128
        %1786 = vxpose.xlu0.b32.cont [10/16] %v651, 128
        %1787 = vxpose.xlu0.b32.cont [11/16] %v654, 128
        %1788 = vxpose.xlu0.b32.cont [12/16] %v657, 128
        %1789 = vxpose.xlu0.b32.cont [13/16] %v660, 128
        %1790 = vxpose.xlu0.b32.cont [14/16] %v663, 128
        %1791 = vxpose.xlu0.b32.cont [15/16] %v666, 128
        %1792 = vxpose.xlu0.b32.end [16/16] %v669, 128
        %v1793 = vpop.trf.xlu0
        %v1794 = vpop.trf.xlu0
        %v1795 = vpop.trf.xlu0
        %v1796 = vpop.trf.xlu0
        %v1797 = vpop.trf.xlu0
        %v1798 = vpop.trf.xlu0
        %v1799 = vpop.trf.xlu0
        %v1800 = vpop.trf.xlu0
        %v1801 = vpop.trf.xlu0
        %v1802 = vpop.trf.xlu0
        %v1803 = vpop.trf.xlu0
        %v1804 = vpop.trf.xlu0
        %v1805 = vpop.trf.xlu0
        %v1806 = vpop.trf.xlu0
        %v1807 = vpop.trf.xlu0
        %v1808 = vpop.trf.xlu0
        %1809 = vxpose.xlu0.b32.start [1/16] %v672, 128
        %1810 = vxpose.xlu0.b32.cont [2/16] %v675, 128
        %1811 = vxpose.xlu0.b32.cont [3/16] %v678, 128
        %1812 = vxpose.xlu0.b32.cont [4/16] %v681, 128
        %1813 = vxpose.xlu0.b32.cont [5/16] %v684, 128
        %1814 = vxpose.xlu0.b32.cont [6/16] %v687, 128
        %1815 = vxpose.xlu0.b32.cont [7/16] %v690, 128
        %1816 = vxpose.xlu0.b32.cont [8/16] %v693, 128
        %1817 = vxpose.xlu0.b32.cont [9/16] %v696, 128
        %1818 = vxpose.xlu0.b32.cont [10/16] %v699, 128
        %1819 = vxpose.xlu0.b32.cont [11/16] %v702, 128
        %1820 = vxpose.xlu0.b32.cont [12/16] %v705, 128
        %1821 = vxpose.xlu0.b32.cont [13/16] %v708, 128
        %1822 = vxpose.xlu0.b32.cont [14/16] %v711, 128
        %1823 = vxpose.xlu0.b32.cont [15/16] %v714, 128
        %1824 = vxpose.xlu0.b32.end [16/16] %v717, 128
        %v1825 = vpop.trf.xlu0
        %v1826 = vpop.trf.xlu0
        %v1827 = vpop.trf.xlu0
        %v1828 = vpop.trf.xlu0
        %v1829 = vpop.trf.xlu0
        %v1830 = vpop.trf.xlu0
        %v1831 = vpop.trf.xlu0
        %v1832 = vpop.trf.xlu0
        %v1833 = vpop.trf.xlu0
        %v1834 = vpop.trf.xlu0
        %v1835 = vpop.trf.xlu0
        %v1836 = vpop.trf.xlu0
        %v1837 = vpop.trf.xlu0
        %v1838 = vpop.trf.xlu0
        %v1839 = vpop.trf.xlu0
        %v1840 = vpop.trf.xlu0
        %1841 = vmatpush.xpose.msra.mxu0 %v1166
        %1842 = vmatpush.xpose.msra.mxu0 %v1162
        %1843 = vmatpush.xpose.msra.mxu0 %v1158
        %1844 = vmatpush.xpose.msra.mxu0 %v1154
        %1845 = vmatpush.xpose.msra.mxu0 %v1150
        %1846 = vmatpush.xpose.msra.mxu0 %v1146
        %1847 = vmatpush.xpose.msra.mxu0 %v1142
        %1848 = vmatpush.xpose.msra.mxu0 %v1138
        %1849 = vmatpush.xpose.msra.mxu0 %v1134
        %1850 = vmatpush.xpose.msra.mxu0 %v1130
        %1851 = vmatpush.xpose.msra.mxu0 %v1126
        %1852 = vmatpush.xpose.msra.mxu0 %v1122
        %1853 = vmatpush.xpose.msra.mxu0 %v1118
        %1854 = vmatpush.xpose.msra.mxu0 %v1114
        %1855 = vmatpush.xpose.msra.mxu0 %v1110
        %1856 = vmatpush.xpose.msra.mxu0 %v1106
        %1857 = vmatmul.f32.gmra.mxu0 %v1793
        %v1858 = vpop.f32.mrf.mxu0
        %v1859 = vadd.f32 0.0, %v1858
        %1860 = vmatmul.f32.gmra.mxu0 %v1794
        %v1861 = vpop.f32.mrf.mxu0
        %v1862 = vadd.f32 0.0, %v1861
        %1863 = vmatmul.f32.gmra.mxu0 %v1795
        %v1864 = vpop.f32.mrf.mxu0
        %v1865 = vadd.f32 0.0, %v1864
        %1866 = vmatmul.f32.gmra.mxu0 %v1796
        %v1867 = vpop.f32.mrf.mxu0
        %v1868 = vadd.f32 0.0, %v1867
        %1869 = vmatmul.f32.gmra.mxu0 %v1797
        %v1870 = vpop.f32.mrf.mxu0
        %v1871 = vadd.f32 0.0, %v1870
        %1872 = vmatmul.f32.gmra.mxu0 %v1798
        %v1873 = vpop.f32.mrf.mxu0
        %v1874 = vadd.f32 0.0, %v1873
        %1875 = vmatmul.f32.gmra.mxu0 %v1799
        %v1876 = vpop.f32.mrf.mxu0
        %v1877 = vadd.f32 0.0, %v1876
        %1878 = vmatmul.f32.gmra.mxu0 %v1800
        %v1879 = vpop.f32.mrf.mxu0
        %v1880 = vadd.f32 0.0, %v1879
        %1881 = vmatmul.f32.gmra.mxu0 %v1801
        %v1882 = vpop.f32.mrf.mxu0
        %v1883 = vadd.f32 0.0, %v1882
        %1884 = vmatmul.f32.gmra.mxu0 %v1802
        %v1885 = vpop.f32.mrf.mxu0
        %v1886 = vadd.f32 0.0, %v1885
        %1887 = vmatmul.f32.gmra.mxu0 %v1803
        %v1888 = vpop.f32.mrf.mxu0
        %v1889 = vadd.f32 0.0, %v1888
        %1890 = vmatmul.f32.gmra.mxu0 %v1804
        %v1891 = vpop.f32.mrf.mxu0
        %v1892 = vadd.f32 0.0, %v1891
        %1893 = vmatmul.f32.gmra.mxu0 %v1805
        %v1894 = vpop.f32.mrf.mxu0
        %v1895 = vadd.f32 0.0, %v1894
        %1896 = vmatmul.f32.gmra.mxu0 %v1806
        %v1897 = vpop.f32.mrf.mxu0
        %v1898 = vadd.f32 0.0, %v1897
        %1899 = vmatmul.f32.gmra.mxu0 %v1807
        %v1900 = vpop.f32.mrf.mxu0
        %v1901 = vadd.f32 0.0, %v1900
        %1902 = vmatmul.f32.gmra.mxu0 %v1808
        %v1903 = vpop.f32.mrf.mxu0
        %v1904 = vadd.f32 0.0, %v1903
        %1905 = vdwg.mxu0
        %1906 = vmatpush.xpose.msra.mxu0 %v1168
        %1907 = vmatpush.xpose.msra.mxu0 %v1164
        %1908 = vmatpush.xpose.msra.mxu0 %v1160
        %1909 = vmatpush.xpose.msra.mxu0 %v1156
        %1910 = vmatpush.xpose.msra.mxu0 %v1152
        %1911 = vmatpush.xpose.msra.mxu0 %v1148
        %1912 = vmatpush.xpose.msra.mxu0 %v1144
        %1913 = vmatpush.xpose.msra.mxu0 %v1140
        %1914 = vmatpush.xpose.msra.mxu0 %v1136
        %1915 = vmatpush.xpose.msra.mxu0 %v1132
        %1916 = vmatpush.xpose.msra.mxu0 %v1128
        %1917 = vmatpush.xpose.msra.mxu0 %v1124
        %1918 = vmatpush.xpose.msra.mxu0 %v1120
        %1919 = vmatpush.xpose.msra.mxu0 %v1116
        %1920 = vmatpush.xpose.msra.mxu0 %v1112
        %1921 = vmatpush.xpose.msra.mxu0 %v1108
        %1922 = vmatmul.f32.gmra.mxu0 %v1825
        %v1923 = vpop.f32.mrf.mxu0
        %v1924 = vadd.f32 %v1859, %v1923
        %1925 = vmatmul.f32.gmra.mxu0 %v1826
        %v1926 = vpop.f32.mrf.mxu0
        %v1927 = vadd.f32 %v1862, %v1926
        %1928 = vmatmul.f32.gmra.mxu0 %v1827
        %v1929 = vpop.f32.mrf.mxu0
        %v1930 = vadd.f32 %v1865, %v1929
        %1931 = vmatmul.f32.gmra.mxu0 %v1828
        %v1932 = vpop.f32.mrf.mxu0
        %v1933 = vadd.f32 %v1868, %v1932
        %1934 = vmatmul.f32.gmra.mxu0 %v1829
        %v1935 = vpop.f32.mrf.mxu0
        %v1936 = vadd.f32 %v1871, %v1935
        %1937 = vmatmul.f32.gmra.mxu0 %v1830
        %v1938 = vpop.f32.mrf.mxu0
        %v1939 = vadd.f32 %v1874, %v1938
        %1940 = vmatmul.f32.gmra.mxu0 %v1831
        %v1941 = vpop.f32.mrf.mxu0
        %v1942 = vadd.f32 %v1877, %v1941
        %1943 = vmatmul.f32.gmra.mxu0 %v1832
        %v1944 = vpop.f32.mrf.mxu0
        %v1945 = vadd.f32 %v1880, %v1944
        %1946 = vmatmul.f32.gmra.mxu0 %v1833
        %v1947 = vpop.f32.mrf.mxu0
        %v1948 = vadd.f32 %v1883, %v1947
        %1949 = vmatmul.f32.gmra.mxu0 %v1834
        %v1950 = vpop.f32.mrf.mxu0
        %v1951 = vadd.f32 %v1886, %v1950
        %1952 = vmatmul.f32.gmra.mxu0 %v1835
        %v1953 = vpop.f32.mrf.mxu0
        %v1954 = vadd.f32 %v1889, %v1953
        %1955 = vmatmul.f32.gmra.mxu0 %v1836
        %v1956 = vpop.f32.mrf.mxu0
        %v1957 = vadd.f32 %v1892, %v1956
        %1958 = vmatmul.f32.gmra.mxu0 %v1837
        %v1959 = vpop.f32.mrf.mxu0
        %v1960 = vadd.f32 %v1895, %v1959
        %1961 = vmatmul.f32.gmra.mxu0 %v1838
        %v1962 = vpop.f32.mrf.mxu0
        %v1963 = vadd.f32 %v1898, %v1962
        %1964 = vmatmul.f32.gmra.mxu0 %v1839
        %v1965 = vpop.f32.mrf.mxu0
        %v1966 = vadd.f32 %v1901, %v1965
        %1967 = vmatmul.f32.gmra.mxu0 %v1840
        %v1968 = vpop.f32.mrf.mxu0
        %v1969 = vadd.f32 %v1904, %v1968
        %1970 = vdwg.mxu0
        %1971 = vmatpush.xpose.msra.mxu0 %v1230
        %1972 = vmatpush.xpose.msra.mxu0 %v1226
        %1973 = vmatpush.xpose.msra.mxu0 %v1222
        %1974 = vmatpush.xpose.msra.mxu0 %v1218
        %1975 = vmatpush.xpose.msra.mxu0 %v1214
        %1976 = vmatpush.xpose.msra.mxu0 %v1210
        %1977 = vmatpush.xpose.msra.mxu0 %v1206
        %1978 = vmatpush.xpose.msra.mxu0 %v1202
        %1979 = vmatpush.xpose.msra.mxu0 %v1198
        %1980 = vmatpush.xpose.msra.mxu0 %v1194
        %1981 = vmatpush.xpose.msra.mxu0 %v1190
        %1982 = vmatpush.xpose.msra.mxu0 %v1186
        %1983 = vmatpush.xpose.msra.mxu0 %v1182
        %1984 = vmatpush.xpose.msra.mxu0 %v1178
        %1985 = vmatpush.xpose.msra.mxu0 %v1174
        %1986 = vmatpush.xpose.msra.mxu0 %v1170
        %1987 = vmatmul.f32.gmra.mxu0 %v1793
        %v1988 = vpop.f32.mrf.mxu0
        %v1989 = vadd.f32 0.0, %v1988
        %1990 = vmatmul.f32.gmra.mxu0 %v1794
        %v1991 = vpop.f32.mrf.mxu0
        %v1992 = vadd.f32 0.0, %v1991
        %1993 = vmatmul.f32.gmra.mxu0 %v1795
        %v1994 = vpop.f32.mrf.mxu0
        %v1995 = vadd.f32 0.0, %v1994
        %1996 = vmatmul.f32.gmra.mxu0 %v1796
        %v1997 = vpop.f32.mrf.mxu0
        %v1998 = vadd.f32 0.0, %v1997
        %1999 = vmatmul.f32.gmra.mxu0 %v1797
        %v2000 = vpop.f32.mrf.mxu0
        %v2001 = vadd.f32 0.0, %v2000
        %2002 = vmatmul.f32.gmra.mxu0 %v1798
        %v2003 = vpop.f32.mrf.mxu0
        %v2004 = vadd.f32 0.0, %v2003
        %2005 = vmatmul.f32.gmra.mxu0 %v1799
        %v2006 = vpop.f32.mrf.mxu0
        %v2007 = vadd.f32 0.0, %v2006
        %2008 = vmatmul.f32.gmra.mxu0 %v1800
        %v2009 = vpop.f32.mrf.mxu0
        %v2010 = vadd.f32 0.0, %v2009
        %2011 = vmatmul.f32.gmra.mxu0 %v1801
        %v2012 = vpop.f32.mrf.mxu0
        %v2013 = vadd.f32 0.0, %v2012
        %2014 = vmatmul.f32.gmra.mxu0 %v1802
        %v2015 = vpop.f32.mrf.mxu0
        %v2016 = vadd.f32 0.0, %v2015
        %2017 = vmatmul.f32.gmra.mxu0 %v1803
        %v2018 = vpop.f32.mrf.mxu0
        %v2019 = vadd.f32 0.0, %v2018
        %2020 = vmatmul.f32.gmra.mxu0 %v1804
        %v2021 = vpop.f32.mrf.mxu0
        %v2022 = vadd.f32 0.0, %v2021
        %2023 = vmatmul.f32.gmra.mxu0 %v1805
        %v2024 = vpop.f32.mrf.mxu0
        %v2025 = vadd.f32 0.0, %v2024
        %2026 = vmatmul.f32.gmra.mxu0 %v1806
        %v2027 = vpop.f32.mrf.mxu0
        %v2028 = vadd.f32 0.0, %v2027
        %2029 = vmatmul.f32.gmra.mxu0 %v1807
        %v2030 = vpop.f32.mrf.mxu0
        %v2031 = vadd.f32 0.0, %v2030
        %2032 = vmatmul.f32.gmra.mxu0 %v1808
        %v2033 = vpop.f32.mrf.mxu0
        %v2034 = vadd.f32 0.0, %v2033
        %2035 = vdwg.mxu0
        %2036 = vmatpush.xpose.msra.mxu0 %v1232
        %2037 = vmatpush.xpose.msra.mxu0 %v1228
        %2038 = vmatpush.xpose.msra.mxu0 %v1224
        %2039 = vmatpush.xpose.msra.mxu0 %v1220
        %2040 = vmatpush.xpose.msra.mxu0 %v1216
        %2041 = vmatpush.xpose.msra.mxu0 %v1212
        %2042 = vmatpush.xpose.msra.mxu0 %v1208
        %2043 = vmatpush.xpose.msra.mxu0 %v1204
        %2044 = vmatpush.xpose.msra.mxu0 %v1200
        %2045 = vmatpush.xpose.msra.mxu0 %v1196
        %2046 = vmatpush.xpose.msra.mxu0 %v1192
        %2047 = vmatpush.xpose.msra.mxu0 %v1188
        %2048 = vmatpush.xpose.msra.mxu0 %v1184
        %2049 = vmatpush.xpose.msra.mxu0 %v1180
        %2050 = vmatpush.xpose.msra.mxu0 %v1176
        %2051 = vmatpush.xpose.msra.mxu0 %v1172
        %2052 = vmatmul.f32.gmra.mxu0 %v1825
        %v2053 = vpop.f32.mrf.mxu0
        %v2054 = vadd.f32 %v1989, %v2053
        %2055 = vmatmul.f32.gmra.mxu0 %v1826
        %v2056 = vpop.f32.mrf.mxu0
        %v2057 = vadd.f32 %v1992, %v2056
        %2058 = vmatmul.f32.gmra.mxu0 %v1827
        %v2059 = vpop.f32.mrf.mxu0
        %v2060 = vadd.f32 %v1995, %v2059
        %2061 = vmatmul.f32.gmra.mxu0 %v1828
        %v2062 = vpop.f32.mrf.mxu0
        %v2063 = vadd.f32 %v1998, %v2062
        %2064 = vmatmul.f32.gmra.mxu0 %v1829
        %v2065 = vpop.f32.mrf.mxu0
        %v2066 = vadd.f32 %v2001, %v2065
        %2067 = vmatmul.f32.gmra.mxu0 %v1830
        %v2068 = vpop.f32.mrf.mxu0
        %v2069 = vadd.f32 %v2004, %v2068
        %2070 = vmatmul.f32.gmra.mxu0 %v1831
        %v2071 = vpop.f32.mrf.mxu0
        %v2072 = vadd.f32 %v2007, %v2071
        %2073 = vmatmul.f32.gmra.mxu0 %v1832
        %v2074 = vpop.f32.mrf.mxu0
        %v2075 = vadd.f32 %v2010, %v2074
        %2076 = vmatmul.f32.gmra.mxu0 %v1833
        %v2077 = vpop.f32.mrf.mxu0
        %v2078 = vadd.f32 %v2013, %v2077
        %2079 = vmatmul.f32.gmra.mxu0 %v1834
        %v2080 = vpop.f32.mrf.mxu0
        %v2081 = vadd.f32 %v2016, %v2080
        %2082 = vmatmul.f32.gmra.mxu0 %v1835
        %v2083 = vpop.f32.mrf.mxu0
        %v2084 = vadd.f32 %v2019, %v2083
        %2085 = vmatmul.f32.gmra.mxu0 %v1836
        %v2086 = vpop.f32.mrf.mxu0
        %v2087 = vadd.f32 %v2022, %v2086
        %2088 = vmatmul.f32.gmra.mxu0 %v1837
        %v2089 = vpop.f32.mrf.mxu0
        %v2090 = vadd.f32 %v2025, %v2089
        %2091 = vmatmul.f32.gmra.mxu0 %v1838
        %v2092 = vpop.f32.mrf.mxu0
        %v2093 = vadd.f32 %v2028, %v2092
        %2094 = vmatmul.f32.gmra.mxu0 %v1839
        %v2095 = vpop.f32.mrf.mxu0
        %v2096 = vadd.f32 %v2031, %v2095
        %2097 = vmatmul.f32.gmra.mxu0 %v1840
        %v2098 = vpop.f32.mrf.mxu0
        %v2099 = vadd.f32 %v2034, %v2098
        %2100 = vdwg.mxu0
        %v2133 = vlaneseq
        %v2134 = vand.u32 %v2133, 127
        %v2135 = vperm.slane %v1342, %v2134
        %v2136 = vadd.s32 %v2134, 4294967288
        %v2137 = vperm.slane %v1356, %v2136
        %vm2138 = vcmask 130112
        %v2139 = vsel %vm2138, %v2137, %v2135
        %v2140 = vadd.s32 %v2134, 4294967280
        %v2141 = vperm.slane %v1370, %v2140
        %vm2142 = vcmask 195712
        %v2143 = vsel %vm2142, %v2141, %v2139
        %v2144 = vadd.s32 %v2134, 4294967272
        %v2145 = vperm.slane %v1384, %v2144
        %vm2146 = vcmask 261312
        %v2147 = vsel %vm2146, %v2145, %v2143
        %v2148 = vadd.s32 %v2134, 4294967264
        %v2149 = vperm.slane %v1398, %v2148
        %vm2150 = vcmask 326912
        %v2151 = vsel %vm2150, %v2149, %v2147
        %v2152 = vadd.s32 %v2134, 4294967256
        %v2153 = vperm.slane %v1412, %v2152
        %vm2154 = vcmask 392512
        %v2155 = vsel %vm2154, %v2153, %v2151
        %v2156 = vadd.s32 %v2134, 4294967248
        %v2157 = vperm.slane %v1426, %v2156
        %vm2158 = vcmask 458112
        %v2159 = vsel %vm2158, %v2157, %v2155
        %v2160 = vadd.s32 %v2134, 4294967240
        %v2161 = vperm.slane %v1440, %v2160
        %vm2162 = vcmask 523712
        %v2163 = vsel %vm2162, %v2161, %v2159
        %v2164 = vadd.s32 %v2134, 4294967232
        %v2165 = vperm.slane %v1454, %v2164
        %vm2166 = vcmask 589312
        %v2167 = vsel %vm2166, %v2165, %v2163
        %v2168 = vadd.s32 %v2134, 4294967224
        %v2169 = vperm.slane %v1468, %v2168
        %vm2170 = vcmask 654912
        %v2171 = vsel %vm2170, %v2169, %v2167
        %v2172 = vadd.s32 %v2134, 4294967216
        %v2173 = vperm.slane %v1482, %v2172
        %vm2174 = vcmask 720512
        %v2175 = vsel %vm2174, %v2173, %v2171
        %v2176 = vadd.s32 %v2134, 4294967208
        %v2177 = vperm.slane %v1496, %v2176
        %vm2178 = vcmask 786112
        %v2179 = vsel %vm2178, %v2177, %v2175
        %v2180 = vadd.s32 %v2134, 4294967200
        %v2181 = vperm.slane %v1510, %v2180
        %vm2182 = vcmask 851712
        %v2183 = vsel %vm2182, %v2181, %v2179
        %v2184 = vadd.s32 %v2134, 4294967192
        %v2185 = vperm.slane %v1524, %v2184
        %vm2186 = vcmask 917312
        %v2187 = vsel %vm2186, %v2185, %v2183
        %v2188 = vadd.s32 %v2134, 4294967184
        %v2189 = vperm.slane %v1538, %v2188
        %vm2190 = vcmask 982912
        %v2191 = vsel %vm2190, %v2189, %v2187
        %v2192 = vadd.s32 %v2134, 4294967176
        %v2193 = vperm.slane %v1552, %v2192
        %vm2194 = vcmask 1048512
        %v2195 = vsel %vm2194, %v2193, %v2191
        %v2196 = vperm.slane %v1566, %v2134
        %v2197 = vperm.slane %v1580, %v2136
        %v2198 = vsel %vm2138, %v2197, %v2196
        %v2199 = vperm.slane %v1594, %v2140
        %v2200 = vsel %vm2142, %v2199, %v2198
        %v2201 = vperm.slane %v1608, %v2144
        %v2202 = vsel %vm2146, %v2201, %v2200
        %v2203 = vperm.slane %v1622, %v2148
        %v2204 = vsel %vm2150, %v2203, %v2202
        %v2205 = vperm.slane %v1636, %v2152
        %v2206 = vsel %vm2154, %v2205, %v2204
        %v2207 = vperm.slane %v1650, %v2156
        %v2208 = vsel %vm2158, %v2207, %v2206
        %v2209 = vperm.slane %v1664, %v2160
        %v2210 = vsel %vm2162, %v2209, %v2208
        %v2211 = vperm.slane %v1678, %v2164
        %v2212 = vsel %vm2166, %v2211, %v2210
        %v2213 = vperm.slane %v1692, %v2168
        %v2214 = vsel %vm2170, %v2213, %v2212
        %v2215 = vperm.slane %v1706, %v2172
        %v2216 = vsel %vm2174, %v2215, %v2214
        %v2217 = vperm.slane %v1720, %v2176
        %v2218 = vsel %vm2178, %v2217, %v2216
        %v2219 = vperm.slane %v1734, %v2180
        %v2220 = vsel %vm2182, %v2219, %v2218
        %v2221 = vperm.slane %v1748, %v2184
        %v2222 = vsel %vm2186, %v2221, %v2220
        %v2223 = vperm.slane %v1762, %v2188
        %v2224 = vsel %vm2190, %v2223, %v2222
        %v2225 = vperm.slane %v1776, %v2192
        %v2226 = vsel %vm2194, %v2225, %v2224
        %vm2227 = vcmask 1042434
        %v2228 = vsel %vm2227, %v2195, %v2195
        %vm2229 = vcmask 1043459
        %v2230 = vsel %vm2229, %v2195, %v2228
        %vm2231 = vcmask 1044484
        %v2232 = vsel %vm2231, %v2195, %v2230
        %vm2233 = vcmask 1045509
        %v2234 = vsel %vm2233, %v2195, %v2232
        %vm2235 = vcmask 1046534
        %v2236 = vsel %vm2235, %v2195, %v2234
        %vm2237 = vcmask 1047559
        %v2238 = vsel %vm2237, %v2195, %v2236
        %v2239 = vsel %vm2227, %v2226, %v2226
        %v2240 = vsel %vm2229, %v2226, %v2239
        %v2241 = vsel %vm2231, %v2226, %v2240
        %v2242 = vsel %vm2233, %v2226, %v2241
        %v2243 = vsel %vm2235, %v2226, %v2242
        %v2244 = vsel %vm2237, %v2226, %v2243
        %v2247 = vmul.f32 %v1924, %v2238
        %v2248 = vmul.f32 %v2054, %v2244
        %v2249 = vmul.f32 %v1927, %v2238
        %v2250 = vmul.f32 %v2057, %v2244
        %v2251 = vmul.f32 %v1930, %v2238
        %v2252 = vmul.f32 %v2060, %v2244
        %v2253 = vmul.f32 %v1933, %v2238
        %v2254 = vmul.f32 %v2063, %v2244
        %v2255 = vmul.f32 %v1936, %v2238
        %v2256 = vmul.f32 %v2066, %v2244
        %v2257 = vmul.f32 %v1939, %v2238
        %v2258 = vmul.f32 %v2069, %v2244
        %v2259 = vmul.f32 %v1942, %v2238
        %v2260 = vmul.f32 %v2072, %v2244
        %v2261 = vmul.f32 %v1945, %v2238
        %v2262 = vmul.f32 %v2075, %v2244
        %v2263 = vmul.f32 %v1948, %v2238
        %v2264 = vmul.f32 %v2078, %v2244
        %v2265 = vmul.f32 %v1951, %v2238
        %v2266 = vmul.f32 %v2081, %v2244
        %v2267 = vmul.f32 %v1954, %v2238
        %v2268 = vmul.f32 %v2084, %v2244
        %v2269 = vmul.f32 %v1957, %v2238
        %v2270 = vmul.f32 %v2087, %v2244
        %v2271 = vmul.f32 %v1960, %v2238
        %v2272 = vmul.f32 %v2090, %v2244
        %v2273 = vmul.f32 %v1963, %v2238
        %v2274 = vmul.f32 %v2093, %v2244
        %v2275 = vmul.f32 %v1966, %v2238
        %v2276 = vmul.f32 %v2096, %v2244
        %v2277 = vmul.f32 %v1969, %v2238
        %v2278 = vmul.f32 %v2099, %v2244
        %v2279 = vld [vmem:[%s250] sm:$0xff]
        %v2280 = vld [vmem:[%s250 + $0x8] sm:$0xff]
        %v2281 = vld [vmem:[%s250 + $0x10] sm:$0xff]
        %v2282 = vld [vmem:[%s250 + $0x18] sm:$0xff]
        %v2283 = vld [vmem:[%s250 + $0x20] sm:$0xff]
        %v2284 = vld [vmem:[%s250 + $0x28] sm:$0xff]
        %v2285 = vld [vmem:[%s250 + $0x30] sm:$0xff]
        %v2286 = vld [vmem:[%s250 + $0x38] sm:$0xff]
        %v2287 = vld [vmem:[%s250 + $0x40] sm:$0xff]
        %v2288 = vld [vmem:[%s250 + $0x48] sm:$0xff]
        %v2289 = vld [vmem:[%s250 + $0x50] sm:$0xff]
        %v2290 = vld [vmem:[%s250 + $0x58] sm:$0xff]
        %v2291 = vld [vmem:[%s250 + $0x60] sm:$0xff]
        %v2292 = vld [vmem:[%s250 + $0x68] sm:$0xff]
        %v2293 = vld [vmem:[%s250 + $0x70] sm:$0xff]
        %v2294 = vld [vmem:[%s250 + $0x78] sm:$0xff]
        %v2295 = vld [vmem:[%s250 + $0x80] sm:$0xff]
        %v2296 = vld [vmem:[%s250 + $0x88] sm:$0xff]
        %v2297 = vld [vmem:[%s250 + $0x90] sm:$0xff]
        %v2298 = vld [vmem:[%s250 + $0x98] sm:$0xff]
        %v2299 = vld [vmem:[%s250 + $0xa0] sm:$0xff]
        %v2300 = vld [vmem:[%s250 + $0xa8] sm:$0xff]
        %v2301 = vld [vmem:[%s250 + $0xb0] sm:$0xff]
        %v2302 = vld [vmem:[%s250 + $0xb8] sm:$0xff]
        %v2303 = vld [vmem:[%s250 + $0xc0] sm:$0xff]
        %v2304 = vld [vmem:[%s250 + $0xc8] sm:$0xff]
        %v2305 = vld [vmem:[%s250 + $0xd0] sm:$0xff]
        %v2306 = vld [vmem:[%s250 + $0xd8] sm:$0xff]
        %v2307 = vld [vmem:[%s250 + $0xe0] sm:$0xff]
        %v2308 = vld [vmem:[%s250 + $0xe8] sm:$0xff]
        %v2309 = vld [vmem:[%s250 + $0xf0] sm:$0xff]
        %v2310 = vld [vmem:[%s250 + $0xf8] sm:$0xff]
        %v2311 = vadd.f32 %v2247, %v2279
        %v2312 = vadd.f32 %v2248, %v2280
        %v2313 = vadd.f32 %v2249, %v2281
        %v2314 = vadd.f32 %v2250, %v2282
        %v2315 = vadd.f32 %v2251, %v2283
        %v2316 = vadd.f32 %v2252, %v2284
        %v2317 = vadd.f32 %v2253, %v2285
        %v2318 = vadd.f32 %v2254, %v2286
        %v2319 = vadd.f32 %v2255, %v2287
        %v2320 = vadd.f32 %v2256, %v2288
        %v2321 = vadd.f32 %v2257, %v2289
        %v2322 = vadd.f32 %v2258, %v2290
        %v2323 = vadd.f32 %v2259, %v2291
        %v2324 = vadd.f32 %v2260, %v2292
        %v2325 = vadd.f32 %v2261, %v2293
        %v2326 = vadd.f32 %v2262, %v2294
        %v2327 = vadd.f32 %v2263, %v2295
        %v2328 = vadd.f32 %v2264, %v2296
        %v2329 = vadd.f32 %v2265, %v2297
        %v2330 = vadd.f32 %v2266, %v2298
        %v2331 = vadd.f32 %v2267, %v2299
        %v2332 = vadd.f32 %v2268, %v2300
        %v2333 = vadd.f32 %v2269, %v2301
        %v2334 = vadd.f32 %v2270, %v2302
        %v2335 = vadd.f32 %v2271, %v2303
        %v2336 = vadd.f32 %v2272, %v2304
        %v2337 = vadd.f32 %v2273, %v2305
        %v2338 = vadd.f32 %v2274, %v2306
        %v2339 = vadd.f32 %v2275, %v2307
        %v2340 = vadd.f32 %v2276, %v2308
        %v2341 = vadd.f32 %v2277, %v2309
        %v2342 = vadd.f32 %v2278, %v2310
        %2343 = vst [vmem:[%s290] sm:$0xff] %v2311
        %2344 = vst [vmem:[%s290 + $0x8] sm:$0xff] %v2312
        %2345 = vst [vmem:[%s290 + $0x10] sm:$0xff] %v2313
        %2346 = vst [vmem:[%s290 + $0x18] sm:$0xff] %v2314
        %2347 = vst [vmem:[%s290 + $0x20] sm:$0xff] %v2315
        %2348 = vst [vmem:[%s290 + $0x28] sm:$0xff] %v2316
        %2349 = vst [vmem:[%s290 + $0x30] sm:$0xff] %v2317
        %2350 = vst [vmem:[%s290 + $0x38] sm:$0xff] %v2318
        %2351 = vst [vmem:[%s290 + $0x40] sm:$0xff] %v2319
        %2352 = vst [vmem:[%s290 + $0x48] sm:$0xff] %v2320
        %2353 = vst [vmem:[%s290 + $0x50] sm:$0xff] %v2321
        %2354 = vst [vmem:[%s290 + $0x58] sm:$0xff] %v2322
        %2355 = vst [vmem:[%s290 + $0x60] sm:$0xff] %v2323
        %2356 = vst [vmem:[%s290 + $0x68] sm:$0xff] %v2324
        %2357 = vst [vmem:[%s290 + $0x70] sm:$0xff] %v2325
        %2358 = vst [vmem:[%s290 + $0x78] sm:$0xff] %v2326
        %2359 = vst [vmem:[%s290 + $0x80] sm:$0xff] %v2327
        %2360 = vst [vmem:[%s290 + $0x88] sm:$0xff] %v2328
        %2361 = vst [vmem:[%s290 + $0x90] sm:$0xff] %v2329
        %2362 = vst [vmem:[%s290 + $0x98] sm:$0xff] %v2330
        %2363 = vst [vmem:[%s290 + $0xa0] sm:$0xff] %v2331
        %2364 = vst [vmem:[%s290 + $0xa8] sm:$0xff] %v2332
        %2365 = vst [vmem:[%s290 + $0xb0] sm:$0xff] %v2333
        %2366 = vst [vmem:[%s290 + $0xb8] sm:$0xff] %v2334
        %2367 = vst [vmem:[%s290 + $0xc0] sm:$0xff] %v2335
        %2368 = vst [vmem:[%s290 + $0xc8] sm:$0xff] %v2336
        %2369 = vst [vmem:[%s290 + $0xd0] sm:$0xff] %v2337
        %2370 = vst [vmem:[%s290 + $0xd8] sm:$0xff] %v2338
        %2371 = vst [vmem:[%s290 + $0xe0] sm:$0xff] %v2339
        %2372 = vst [vmem:[%s290 + $0xe8] sm:$0xff] %v2340
        %2373 = vst [vmem:[%s290 + $0xf0] sm:$0xff] %v2341
        %2374 = vst [vmem:[%s290 + $0xf8] sm:$0xff] %v2342
        %s2375 = sand.u32 %s127, 1
        %s2376 = scalar_lea.sflag [#allocation4], %s2375
        %s2377 = sand.u32 %s127, 1
        %s2378 = smul.addr %s2377, 256
        %s2379 = scalar_lea.vmem [#allocation10], %s2378
        // Predicated region
        $region53: #{tpu_custom_call.1} parent=35 // pred_check
          %p2380 = pneg %p137
        $region54: #{tpu_custom_call.1} parent=35 // pred_check_branch
          %2382 = sbr.rel (%p2380) target = $region56
        $region55: #{tpu_custom_call.1} parent=35 // pred_region
          %2384 = vsyncadd %s2376, 0
          %s2385 = smul.addr %s25, 32
          %s2386 = smul.addr %s2385, 8
          %s2387 = scalar_lea.hbm %s4, %s2386
          %s2388 = sshll.u32 %s2379, 4
          %s2389 = int_to_ptr.vmem [resolvable:$true] %s2388
          %s2390 = sshll.u32 %s2387, 4
          %s2391 = int_to_ptr.hbm [resolvable:$true] %s2390
          %2396 = dma.vmem_to_hbm [thread:$0]  %s2389, 4096, %s2391, %s2376, 256, 256, 16
        $region56: #{tpu_custom_call.1} parent=35 // pred_fallthru
          _
      $region36: #{tpu_custom_call.1} parent=5 // pred_fallthru
        _
      %p2397 = scmp.le.s32.totalorder 2, %s20
      // Predicated region
      $region57: #{tpu_custom_call.1} parent=5 // pred_check
        %p2398 = pneg %p2397
      $region58: #{tpu_custom_call.1} parent=5 // pred_check_branch
        %2400 = sbr.rel (%p2398) target = $region60
      $region59: #{tpu_custom_call.1} parent=5 // pred_region
        %s2401 = ssub.s32 %s20, 2
        // Predicated region
        $region61: #{tpu_custom_call.1} parent=59 // pred_check
          %p2402 = pneg %p143
        $region62: #{tpu_custom_call.1} parent=59 // pred_check_branch
          %2404 = sbr.rel (%p2402) target = $region64
        $region63: #{tpu_custom_call.1} parent=59 // pred_region
          %s2405 = sand.u32 %s128, 1
          %s2406 = scalar_lea.sflag [#allocation4], %s2405
          %s2407 = sand.u32 %s128, 1
          %s2408 = smul.addr %s2407, 256
          %s2409 = scalar_lea.vmem [#allocation10], %s2408
          %2411 = dma.done %s2406, 4096
        $region64: #{tpu_custom_call.1} parent=59 // pred_fallthru
          _
      $region60: #{tpu_custom_call.1} parent=5 // pred_fallthru
        _
    $region6: #{tpu_custom_call.1} parent=1 // loop_footer
      %s24 = sadd.s32 1, %s20
    $region7: #{tpu_custom_call.1} parent=1 // loop_footer_branch
      %19 = sbr.rel target = $region3
    $region8: #{tpu_custom_call.1} parent=1 // loop_exit
      _
    %2412 = vsyncpa [#allocation3], 1
    %s2413 = scalar_lea.sflag [#allocation3], 1
    %2414 = vsyncpa %s2413, 1
    %2415 = vsyncpa [#allocation6], 1
    %s2416 = scalar_lea.sflag [#allocation6], 1
    %2417 = vsyncpa %s2416, 1
    %2418 = vsyncpa [#allocation9], 1
    %2419 = vsyncpa [#allocation4], 1
    %s2420 = scalar_lea.sflag [#allocation4], 1
    %2421 = vsyncpa %s2420, 1

</llo_original>
